<compile_context>
chip_gen: v7x
topology: tpu7x:2x2x1
jax: 0.10.0
libtpu: 0.0.40
codegen_flags: <defaults>
</compile_context>

<pallas_src>
import jax
import jax.numpy as jnp
from jax.experimental import pallas as pl
from jax.experimental.pallas import tpu as pltpu


def _ceil_to(x: int, m: int) -> int:
    return -(-x // m) * m


def _make_interp_matrix(out_size: int, in_size: int, dtype):
    """Bilinear interpolation matrix, half-pixel centers, no antialias.

    Matches torch.nn.functional.interpolate(mode='bilinear',
    align_corners=False, antialias=False), which is what torchvision F.resize
    applies to tensors when antialias is None/False.
    """
    scale = in_size / out_size
    dst = jnp.arange(out_size, dtype=jnp.float32)
    src = (dst + 0.5) * scale - 0.5
    src = jnp.maximum(src, 0.0)                       # PyTorch clamps negatives to 0
    i0 = jnp.floor(src).astype(jnp.int32)
    i0 = jnp.minimum(i0, in_size - 1)
    i1 = jnp.minimum(i0 + 1, in_size - 1)
    lam = src - i0.astype(jnp.float32)
    w = (jax.nn.one_hot(i0, in_size, dtype=jnp.float32) * (1.0 - lam)[:, None]
         + jax.nn.one_hot(i1, in_size, dtype=jnp.float32) * lam[:, None])
    return w.astype(dtype)


def _choose_tiling(n_channels, H, W, s0, s1p, in_itemsize, out_itemsize):
    """Pick (channel block Bc, output-row tile) against a VMEM budget."""
    budget = 16 * 1024 * 1024          # target for the pipelined image/output blocks
    s0_pad8 = _ceil_to(s0, 8)

    def per_channel_bytes(tile_s0):
        in_b = H * W * in_itemsize
        out_b = tile_s0 * s1p * out_itemsize
        inter = (tile_s0 * W + H * s1p) * 4      # f32 intermediates (upper bound)
        return 2 * (in_b + out_b) + inter        # in/out blocks double-buffered

    tile_s0 = s0_pad8
    if per_channel_bytes(tile_s0) > budget and s0_pad8 > 256:
        tile_s0 = 256                            # row-tile big outputs (v7x 64 MiB VMEM)
    bc = int(max(1, min(n_channels, budget // per_channel_bytes(tile_s0))))
    if n_channels >= 2:
        # Keep >= 2 grid steps along the channel axis so both v7x TensorCores
        # (and the DMA pipeline) have work.
        bc = min(bc, -(-n_channels // 2))
    return bc, tile_s0


def _vmem_limit(bc, tile_s0, H, W, s1p, in_itemsize, out_itemsize, compute_itemsize):
    blocks = 2 * bc * (H * W * in_itemsize + tile_s0 * s1p * out_itemsize)
    weights = 2 * 2 * (tile_s0 * H + W * s1p) * compute_itemsize
    inter = bc * (tile_s0 * W + H * s1p) * 4
    est = blocks + weights + inter
    return int(min(64 * 1024 * 1024, max(32 * 1024 * 1024, (est * 3) // 2)))


def _make_resize_kernel(bc, tile_s0, s1p, compute_dtype, h_first):
    def kernel(x_ref, wh_ref, ww_ref, o_ref):
        # x_ref : (bc, H, W)     image channel block
        # wh_ref: (tile_s0, H)   rows of the H interpolation matrix for this tile
        # ww_ref: (W, s1p)       pre-transposed, lane-padded W interpolation matrix
        # o_ref : (bc, tile_s0, s1p)
        x = x_ref[...].astype(compute_dtype)
        wh = wh_ref[...]
        ww = ww_ref[...]
        h_in, w_in = x.shape[1], x.shape[2]
        whb = jnp.broadcast_to(wh[None], (bc, tile_s0, h_in))
        if h_first:
            # Contract H first (batched over channels), then fold the W
            # contraction of all channels into ONE big lane-dense MXU matmul.
            t = jnp.einsum("bth,bhw->btw", whb, x,
                           preferred_element_type=jnp.float32)       # (bc, tile_s0, W)
            t = t.astype(compute_dtype).reshape(bc * tile_s0, w_in)
            out = jnp.dot(t, ww, preferred_element_type=jnp.float32)  # (bc*tile_s0, s1p)
            out = out.reshape(bc, tile_s0, s1p)
        else:
            # W shrinks more: contract W first, then H (both batched over bc).
            wwb = jnp.broadcast_to(ww[None], (bc, w_in, s1p))
            t = jnp.einsum("bhw,bwj->bhj", x, wwb,
                           preferred_element_type=jnp.float32)        # (bc, H, s1p)
            out = jnp.einsum("bth,bhj->btj", whb, t.astype(compute_dtype),
                             preferred_element_type=jnp.float32)      # (bc, tile_s0, s1p)
        o_ref[...] = out.astype(o_ref.dtype)
    return kernel


def resize_short(img, size, max_size=None, *, use_bf16_matmul=False):
    """JAX/Pallas equivalent of ResizeShort.forward for NCHW(+) inputs."""
    if not isinstance(size, int):
        raise TypeError("Size should be int. Got {}".format(type(size)))
    if not size > 0:
        raise ValueError("Size should be positive. Got {}".format(size))
    if max_size is not None:
        # TODO(synk): the module always passes a 2-element (h, w) size, with which
        # torchvision's F.resize rejects max_size; mirror that behaviour here.
        raise ValueError("max_size is not supported with a 2-element target size.")

    orig_shape = img.shape
    H, W = int(orig_shape[-2]), int(orig_shape[-1])
    # Short-edge target size logic — identical to the PyTorch module (which uses
    # Python round() itself before handing F.resize an explicit [s0, s1]).
    if H < W:
        s0 = size
        s1 = round(s0 * W / H)
    else:
        s1 = size
        s0 = round(s1 * H / W)

    # Flatten all leading dims (N, C, extra dims) into one channel axis.
    n_channels = 1
    for s in orig_shape[:-2]:
        n_channels *= int(s)
    x = img.reshape(n_channels, H, W)

    compute_dtype = jnp.bfloat16 if use_bf16_matmul else jnp.float32
    in_itemsize = jnp.dtype(img.dtype).itemsize
    out_itemsize = in_itemsize
    compute_itemsize = jnp.dtype(compute_dtype).itemsize

    # Lane-dense output width (multiple of 128); cropped after the kernel.
    s1p = _ceil_to(s1, 128)

    bc, tile_s0 = _choose_tiling(n_channels, H, W, s0, s1p, in_itemsize, out_itemsize)
    s0_pad = _ceil_to(s0, tile_s0)
    n_s0_blocks = s0_pad // tile_s0
    n_c_blocks = -(-n_channels // bc)
    c_pad = n_c_blocks * bc

    # Interpolation matrices (host-side glue). Ww is pre-transposed once here
    # instead of per grid step inside the kernel; pads are zero rows/cols.
    wh = _make_interp_matrix(s0, H, compute_dtype)
    wh = jnp.pad(wh, ((0, s0_pad - s0), (0, 0)))
    ww_t = _make_interp_matrix(s1, W, compute_dtype).T
    ww_t = jnp.pad(ww_t, ((0, 0), (0, s1p - s1)))

    if c_pad > n_channels:
        x = jnp.pad(x, ((0, c_pad - n_channels), (0, 0), (0, 0)))

    # Pick the contraction order that minimizes FLOPs / intermediate size
    # (apply the axis that shrinks the most first). Row-tiling forces H-first.
    flops_h_first = s0_pad * H * W + s0_pad * W * s1p
    flops_w_first = H * W * s1p + s0_pad * H * s1p
    h_first = (n_s0_blocks > 1) or (flops_h_first <= flops_w_first)

    vmem_limit = _vmem_limit(bc, tile_s0, H, W, s1p, in_itemsize, out_itemsize,
                             compute_itemsize)

    kernel = _make_resize_kernel(bc, tile_s0, s1p, compute_dtype, h_first)

    def run(single_buffer_weights):
        # Weight operands are (near-)constant across the grid; single-buffer them
        # to reclaim VMEM for the image/output tiles (matters most on v7x).
        wkw = {"pipeline_mode": pl.Buffered(1)} if single_buffer_weights else {}
        return pl.pallas_call(
            kernel,
            out_shape=jax.ShapeDtypeStruct((c_pad, s0_pad, s1p), img.dtype),
            grid_spec=pl.GridSpec(
                grid=(n_c_blocks, n_s0_blocks),
                in_specs=[
                    pl.BlockSpec((bc, H, W), lambda b, r: (b, 0, 0)),
                    pl.BlockSpec((tile_s0, H), lambda b, r: (r, 0), **wkw),
                    pl.BlockSpec((W, s1p), lambda b, r: (0, 0), **wkw),
                ],
                out_specs=pl.BlockSpec((bc, tile_s0, s1p), lambda b, r: (b, r, 0)),
            ),
            compiler_params=pltpu.CompilerParams(
                dimension_semantics=("parallel", "parallel"),
                vmem_limit_bytes=vmem_limit,
            ),
        )(x, wh, ww_t)

    try:
        out = run(single_buffer_weights=True)
    except Exception:
        # pl.Buffered(1) is an optimization only — fall back to the default
        # double-buffered pipeline if this JAX/Mosaic build rejects it.
        out = run(single_buffer_weights=False)

    out = out[:n_channels, :s0, :s1]
    return out.reshape(orig_shape[:-2] + (s0, s1))


if __name__ == "__main__":
    key = jax.random.PRNGKey(0)
    # Non-square image so the short-edge logic is exercised:
    # H=16, W=12 -> short edge W -> s1=8, s0=round(8*16/12)=11 -> output (2,4,11,8)
    x = jax.random.normal(key, (2, 4, 16, 12), dtype=jnp.float32)
    y = resize_short(x, size=8)
    jax.block_until_ready(y)
    assert y.shape == (2, 4, 11, 8), y.shape

    # Sanity check: interpolation weights are a partition of unity, so a constant
    # image must resize to the same constant. Also catches any leakage of the
    # lane / channel / row padding into the cropped output.
    ones = jnp.ones((1, 1, 16, 12), dtype=jnp.float32)
    yo = resize_short(ones, size=8)
    jax.block_until_ready(yo)
    assert yo.shape == (1, 1, 11, 8), yo.shape
    assert bool(jnp.all(jnp.abs(yo - 1.0) < 1e-5))

    print("KERNEL_OK")
</pallas_src>

<mosaic_0001>
module attributes {stable_mosaic.version = 11 : i64} {
  func.func @kernel(%arg0: i32, %arg1: i32, %arg2: memref<4x16x12xf32, #tpu.memory_space<vmem>>, %arg3: memref<16x16xf32, #tpu.memory_space<vmem>>, %arg4: memref<12x128xf32, #tpu.memory_space<vmem>>, %arg5: memref<4x16x128xf32, #tpu.memory_space<vmem>>) attributes {dimension_semantics = [#tpu.dimension_semantics<parallel>, #tpu.dimension_semantics<parallel>], iteration_bounds = array<i64: 2, 1>, scalar_prefetch = 0 : i64, scratch_operands = 0 : i64, tpu.core_type = #tpu.core_type<tc>, window_params = [{transform_indices = @transform_0, window_bounds = array<i64: 4, 16, 12>}, {pipeline_mode = #tpu.pipeline_mode<synchronous>, transform_indices = @transform_1, window_bounds = array<i64: 16, 16>}, {pipeline_mode = #tpu.pipeline_mode<synchronous>, transform_indices = @transform_2, window_bounds = array<i64: 12, 128>}, {transform_indices = @transform_3, window_bounds = array<i64: 4, 16, 128>}]} {
    %c0 = arith.constant 0 : index
    %c0_0 = arith.constant 0 : index
    %c0_1 = arith.constant 0 : index
    %0 = vector.load %arg2[%c0, %c0_0, %c0_1] : memref<4x16x12xf32, #tpu.memory_space<vmem>>, vector<4x16x12xf32>
    %c0_2 = arith.constant 0 : index
    %c0_3 = arith.constant 0 : index
    %1 = vector.load %arg3[%c0_2, %c0_3] : memref<16x16xf32, #tpu.memory_space<vmem>>, vector<16x16xf32>
    %c0_4 = arith.constant 0 : index
    %c0_5 = arith.constant 0 : index
    %2 = vector.load %arg4[%c0_4, %c0_5] : memref<12x128xf32, #tpu.memory_space<vmem>>, vector<12x128xf32>
    %3 = vector.shape_cast %1 : vector<16x16xf32> to vector<1x16x16xf32>
    %4 = vector.shape_cast %3 : vector<1x16x16xf32> to vector<1x16x16xf32>
    %5 = vector.broadcast %4 : vector<1x16x16xf32> to vector<4x16x16xf32>
    "tpu.trace_start"() <{level = 10 : i32, message = "bth,bhw->btw"}> : () -> ()
    %cst = arith.constant dense<0.000000e+00> : vector<4x16x12xf32>
    %6 = tpu.matmul %5, %0, %cst {dimension_numbers = #tpu.dot_dimension_numbers<[2], [1], [1], [2], [0, 0, 0, 1, 1, 2], [0], [0]>} : vector<4x16x16xf32>, vector<4x16x12xf32>, vector<4x16x12xf32> -> vector<4x16x12xf32>
    "tpu.trace_stop"() : () -> ()
    %7 = vector.shape_cast %6 : vector<4x16x12xf32> to vector<64x12xf32>
    %cst_6 = arith.constant dense<0.000000e+00> : vector<64x128xf32>
    %8 = tpu.matmul %7, %2, %cst_6 {dimension_numbers = #tpu.dot_dimension_numbers<[1], [0], [0], [1], [0, 0, 1, 1], [], []>} : vector<64x12xf32>, vector<12x128xf32>, vector<64x128xf32> -> vector<64x128xf32>
    %9 = vector.shape_cast %8 : vector<64x128xf32> to vector<4x16x128xf32>
    %c0_7 = arith.constant 0 : index
    %c0_8 = arith.constant 0 : index
    %c0_9 = arith.constant 0 : index
    %10 = vector.load %arg5[%c0_7, %c0_8, %c0_9] : memref<4x16x128xf32, #tpu.memory_space<vmem>>, vector<4x16x128xf32>
    tpu.vector_store %arg5[%c0_7, %c0_8, %c0_9], %9 {strides = array<i32>} : memref<4x16x128xf32, #tpu.memory_space<vmem>>, vector<4x16x128xf32>,
    return
  }
  func.func @transform_0(%arg0: i32, %arg1: i32) -> (i32, i32, i32) {
    %c0_i32 = arith.constant 0 : i32
    %c0_i32_0 = arith.constant 0 : i32
    %c0_i32_1 = arith.constant 0 : i32
    return %arg0, %c0_i32, %c0_i32_0 : i32, i32, i32
  }
  func.func @transform_1(%arg0: i32, %arg1: i32) -> (i32, i32) {
    %c0_i32 = arith.constant 0 : i32
    %c0_i32_0 = arith.constant 0 : i32
    return %arg1, %c0_i32 : i32, i32
  }
  func.func @transform_2(%arg0: i32, %arg1: i32) -> (i32, i32) {
    %c0_i32 = arith.constant 0 : i32
    %c0_i32_0 = arith.constant 0 : i32
    %c0_i32_1 = arith.constant 0 : i32
    return %c0_i32, %c0_i32_0 : i32, i32
  }
  func.func @transform_3(%arg0: i32, %arg1: i32) -> (i32, i32, i32) {
    %c0_i32 = arith.constant 0 : i32
    %c0_i32_0 = arith.constant 0 : i32
    return %arg0, %arg1, %c0_i32 : i32, i32, i32
  }
}

module attributes {stable_mosaic.version = 11 : i64} {
  func.func @kernel(%arg0: i32, %arg1: i32, %arg2: memref<4x16x12xf32, #tpu.memory_space<vmem>>, %arg3: memref<16x16xf32, #tpu.memory_space<vmem>>, %arg4: memref<12x128xf32, #tpu.memory_space<vmem>>, %arg5: memref<4x16x128xf32, #tpu.memory_space<vmem>>) attributes {dimension_semantics = [#tpu.dimension_semantics<parallel>, #tpu.dimension_semantics<parallel>], iteration_bounds = array<i64: 2, 1>, scalar_prefetch = 0 : i64, scratch_operands = 0 : i64, tpu.core_type = #tpu.core_type<tc>, window_params = [{transform_indices = @transform_0, window_bounds = array<i64: 4, 16, 12>}, {transform_indices = @transform_1, window_bounds = array<i64: 16, 16>}, {pipeline_mode = #tpu.pipeline_mode<synchronous>, transform_indices = @transform_2, window_bounds = array<i64: 12, 128>}, {transform_indices = @transform_3, window_bounds = array<i64: 4, 16, 128>}]} {
    %c0 = arith.constant 0 : index
    %c0_0 = arith.constant 0 : index
    %c0_1 = arith.constant 0 : index
    %0 = vector.load %arg2[%c0, %c0_0, %c0_1] : memref<4x16x12xf32, #tpu.memory_space<vmem>>, vector<4x16x12xf32>
    %c0_2 = arith.constant 0 : index
    %c0_3 = arith.constant 0 : index
    %1 = vector.load %arg3[%c0_2, %c0_3] : memref<16x16xf32, #tpu.memory_space<vmem>>, vector<16x16xf32>
    %c0_4 = arith.constant 0 : index
    %c0_5 = arith.constant 0 : index
    %2 = vector.load %arg4[%c0_4, %c0_5] : memref<12x128xf32, #tpu.memory_space<vmem>>, vector<12x128xf32>
    %3 = vector.shape_cast %1 : vector<16x16xf32> to vector<1x16x16xf32>
    %4 = vector.shape_cast %3 : vector<1x16x16xf32> to vector<1x16x16xf32>
    %5 = vector.broadcast %4 : vector<1x16x16xf32> to vector<4x16x16xf32>
    "tpu.trace_start"() <{level = 10 : i32, message = "bth,bhw->btw"}> : () -> ()
    %cst = arith.constant dense<0.000000e+00> : vector<4x16x12xf32>
    %6 = tpu.matmul %5, %0, %cst {dimension_numbers = #tpu.dot_dimension_numbers<[2], [1], [1], [2], [0, 0, 0, 1, 1, 2], [0], [0]>} : vector<4x16x16xf32>, vector<4x16x12xf32>, vector<4x16x12xf32> -> vector<4x16x12xf32>
    "tpu.trace_stop"() : () -> ()
    %7 = vector.shape_cast %6 : vector<4x16x12xf32> to vector<64x12xf32>
    %cst_6 = arith.constant dense<0.000000e+00> : vector<64x128xf32>
    %8 = tpu.matmul %7, %2, %cst_6 {dimension_numbers = #tpu.dot_dimension_numbers<[1], [0], [0], [1], [0, 0, 1, 1], [], []>} : vector<64x12xf32>, vector<12x128xf32>, vector<64x128xf32> -> vector<64x128xf32>
    %9 = vector.shape_cast %8 : vector<64x128xf32> to vector<4x16x128xf32>
    %c0_7 = arith.constant 0 : index
    %c0_8 = arith.constant 0 : index
    %c0_9 = arith.constant 0 : index
    %10 = vector.load %arg5[%c0_7, %c0_8, %c0_9] : memref<4x16x128xf32, #tpu.memory_space<vmem>>, vector<4x16x128xf32>
    tpu.vector_store %arg5[%c0_7, %c0_8, %c0_9], %9 {strides = array<i32>} : memref<4x16x128xf32, #tpu.memory_space<vmem>>, vector<4x16x128xf32>,
    return
  }
  func.func @transform_0(%arg0: i32, %arg1: i32) -> (i32, i32, i32) {
    %c0_i32 = arith.constant 0 : i32
    %c0_i32_0 = arith.constant 0 : i32
    %c0_i32_1 = arith.constant 0 : i32
    return %arg0, %c0_i32, %c0_i32_0 : i32, i32, i32
  }
  func.func @transform_1(%arg0: i32, %arg1: i32) -> (i32, i32) {
    %c0_i32 = arith.constant 0 : i32
    %c0_i32_0 = arith.constant 0 : i32
    return %arg1, %c0_i32 : i32, i32
  }
  func.func @transform_2(%arg0: i32, %arg1: i32) -> (i32, i32) {
    %c0_i32 = arith.constant 0 : i32
    %c0_i32_0 = arith.constant 0 : i32
    %c0_i32_1 = arith.constant 0 : i32
    return %c0_i32, %c0_i32_0 : i32, i32
  }
  func.func @transform_3(%arg0: i32, %arg1: i32) -> (i32, i32, i32) {
    %c0_i32 = arith.constant 0 : i32
    %c0_i32_0 = arith.constant 0 : i32
    return %arg0, %arg1, %c0_i32 : i32, i32, i32
  }
}

</mosaic_0001>

<llo_original>
// kernel: tpu_custom_call.1
$region0: #{tpu_custom_call.1}
  #allocation0 [shape = 'u32[]', space=smem, size = 0x4, offset = 0x4, fixed_abs, tag = 'smem constant byte address 0x4 - core index']
  #allocation1 [shape = 'u32[144,128]{1,0:T(1,128)}', space=vmem, size = 0x12000, scoped, tag = 'internal scratch']
  %s0 = inlined_call_operand.vmem [shape: f32[8,16,12], index: 0, kind: input, shape index: {}]
  %s1 = inlined_call_operand.vmem [shape: f32[16,16], index: 1, kind: input, shape index: {}]
  %s2 = inlined_call_operand.vmem [shape: f32[12,128], index: 2, kind: input, shape index: {}]
  %s3 = inlined_call_operand.hbm [shape: f32[8,16,128], index: 3, kind: output, shape index: {}]
  %s4 = sld [smem:[#allocation0]]
  $region45: #{tpu_custom_call.1} parent=0
    _
  %s6 = ssub.s32 1, %s4
  %s7 = scalar_select 0, %s6, %s4
  $region1: #{tpu_custom_call.1} parent=0
    #allocation2 [shape = 'u8[65536]{0}', space=vmem, size = 0x10000, scoped, tag = 'output window, operand 0']
    #allocation3 [shape = 's32[2]{0}', space=sflag, size = 0x8, scoped, tag = 'scoped memory for tpu_custom_call.1']
    %8 = vsyncpa [#allocation3], 0
    %s9 = scalar_lea.sflag [#allocation3], 1
    %10 = vsyncpa %s9, 0
    loop: start=0, step=1, limit=4
    $region2: #{tpu_custom_call.1} parent=1 // loop_pre_header
      _
    $region3: #{tpu_custom_call.1} parent=1 // loop_header
      %s12 = sphi 0, %s16
      %p13 = scmp.ge.s32.totalorder %s12, 4
      %s19 = sphi 0, %s31
      %s20 = sphi 0, %s27
      %s21 = sphi 0, %s19
      %s22 = sphi 0, %s20
      %s23 = sphi 0, %s21
      %s24 = sphi 0, %s22
      %s34 = sphi 0, %s36
      %s37 = sphi 0, %s34
      %s38 = sphi 0, %s37
      %s54 = sphi 0, %s38
      %s60 = sphi 0, %s62
      %s63 = sphi 0, %s60
      %s64 = sphi 0, %s63
      %s80 = sphi 0, %s64
      %s84 = sphi 0, %s84
      %s86 = sphi 0, %s84
      %s87 = sphi 0, %s86
      %s101 = sphi 0, %s87
      %s109 = sphi 0, %s111
      %s112 = sphi 0, %s109
      %s113 = sphi 0, %s112
      %s129 = sphi 0, %s113
    $region4: #{tpu_custom_call.1} parent=1 // loop_header_branch
      %15 = sbr.rel (%p13) target = $region8
    $region5: #{tpu_custom_call.1} parent=1 // loop_body
      %s17 = ssub.s32 %s12, 1
      %s18 = ssub.s32 %s12, 2
      %s25 = sadd.s32 1, %s20
      %p26 = scmp.ge.s32.totalorder %s25, 1
      %s27 = scalar_select %p26, 0, %s25
      %s28 = sadd.s32 1, %s19
      %s29 = scalar_select %p26, %s28, %s19
      %p30 = scmp.ge.s32.totalorder %s29, 2
      %s31 = scalar_select %p30, 0, %s29
      %s32 = ssub.s32 %s19, %s31
      %p33 = scmp.eq.s32.totalorder %s32, 0
      %s35 = sadd.s32 %s34, 1
      %s36 = scalar_select %p33, %s34, %s35
      %p39 = pneg %p33
      %p40 = scmp.eq.s32.totalorder %s12, 1
      %p41 = por %p39, %p40
      %p42 = scmp.ne.s32.totalorder %s34, %s37
      %p43 = scmp.eq.s32.totalorder %s12, 0
      %p44 = por %p42, %p43
      %p45 = scmp.ne.s32.totalorder %s34, %s37
      %p46 = scmp.eq.s32.totalorder %s17, 1
      %p47 = por %p45, %p46
      %p48 = scmp.ne.s32.totalorder %s37, %s38
      %p49 = scmp.eq.s32.totalorder %s17, 0
      %p50 = por %p48, %p49
      %p51 = scmp.ne.s32.totalorder %s37, %s38
      %p52 = scmp.eq.s32.totalorder %s18, 1
      %p53 = por %p51, %p52
      %p55 = scmp.ne.s32.totalorder %s38, %s54
      %p56 = scmp.eq.s32.totalorder %s18, 0
      %p57 = por %p55, %p56
      %s58 = ssub.s32 %s20, %s27
      %p59 = scmp.eq.s32.totalorder %s58, 0
      %s61 = sadd.s32 %s60, 1
      %s62 = scalar_select %p59, %s60, %s61
      %p65 = pneg %p59
      %p66 = scmp.eq.s32.totalorder %s12, 1
      %p67 = por %p65, %p66
      %p68 = scmp.ne.s32.totalorder %s60, %s63
      %p69 = scmp.eq.s32.totalorder %s12, 0
      %p70 = por %p68, %p69
      %p71 = scmp.ne.s32.totalorder %s60, %s63
      %p72 = scmp.eq.s32.totalorder %s17, 1
      %p73 = por %p71, %p72
      %p74 = scmp.ne.s32.totalorder %s63, %s64
      %p75 = scmp.eq.s32.totalorder %s17, 0
      %p76 = por %p74, %p75
      %p77 = scmp.ne.s32.totalorder %s63, %s64
      %p78 = scmp.eq.s32.totalorder %s18, 1
      %p79 = por %p77, %p78
      %p81 = scmp.ne.s32.totalorder %s64, %s80
      %p82 = scmp.eq.s32.totalorder %s18, 0
      %p83 = por %p81, %p82
      %s85 = sadd.s32 %s84, 1
      %p88 = scmp.eq.s32.totalorder %s12, 1
      %p89 = scmp.ne.s32.totalorder %s84, %s86
      %p90 = scmp.eq.s32.totalorder %s12, 0
      %p91 = por %p89, %p90
      %p92 = scmp.ne.s32.totalorder %s84, %s86
      %p93 = scmp.eq.s32.totalorder %s17, 1
      %p94 = por %p92, %p93
      %p95 = scmp.ne.s32.totalorder %s86, %s87
      %p96 = scmp.eq.s32.totalorder %s17, 0
      %p97 = por %p95, %p96
      %p98 = scmp.ne.s32.totalorder %s86, %s87
      %p99 = scmp.eq.s32.totalorder %s18, 1
      %p100 = por %p98, %p99
      %p102 = scmp.ne.s32.totalorder %s87, %s101
      %p103 = scmp.eq.s32.totalorder %s18, 0
      %p104 = por %p102, %p103
      %s105 = ssub.s32 %s19, %s31
      %s106 = ssub.s32 %s20, %s27
      %s107 = sor.u32 %s105, %s106
      %p108 = scmp.eq.s32.totalorder %s107, 0
      %s110 = sadd.s32 %s109, 1
      %s111 = scalar_select %p108, %s109, %s110
      %p114 = pneg %p108
      %p115 = scmp.eq.s32.totalorder %s12, 1
      %p116 = por %p114, %p115
      %p117 = scmp.ne.s32.totalorder %s109, %s112
      %p118 = scmp.eq.s32.totalorder %s12, 0
      %p119 = por %p117, %p118
      %p120 = scmp.ne.s32.totalorder %s109, %s112
      %p121 = scmp.eq.s32.totalorder %s17, 1
      %p122 = por %p120, %p121
      %p123 = scmp.ne.s32.totalorder %s112, %s113
      %p124 = scmp.eq.s32.totalorder %s17, 0
      %p125 = por %p123, %p124
      %p126 = scmp.ne.s32.totalorder %s112, %s113
      %p127 = scmp.eq.s32.totalorder %s18, 1
      %p128 = por %p126, %p127
      %p130 = scmp.ne.s32.totalorder %s113, %s129
      %p131 = scmp.eq.s32.totalorder %s18, 0
      %p132 = por %p130, %p131
      %p133 = scmp.le.s32.totalorder 1, %s12
      %p134 = scmp.lt.s32.totalorder %s12, 3
      %p135 = pnand %p133, %p134
      %p136 = pneg %p135
      // Predicated region
      $region9: #{tpu_custom_call.1} parent=5 // pred_check
        _
      $region10: #{tpu_custom_call.1} parent=5 // pred_check_branch
        %138 = sbr.rel (%p135) target = $region12
      $region11: #{tpu_custom_call.1} parent=5 // pred_region
        %s139 = ssub.s32 %s12, 1
        // Predicated region
        $region13: #{tpu_custom_call.1} parent=11 // pred_check
          %p140 = pneg %p76
        $region14: #{tpu_custom_call.1} parent=11 // pred_check_branch
          %142 = sbr.rel (%p140) target = $region16
        $region15: #{tpu_custom_call.1} parent=11 // pred_region
          %s143 = smul.u32 2, %s22
          %p144 = scmp.lt.s32.totalorder %s143, 1
          %s145 = scalar_select %p144, %s143, 1
          %s146 = smul.addr %s145, 8
          %s147 = scalar_lea.vmem %s1, %s146
          %s148 = smul.u32 2, %s22
        $region16: #{tpu_custom_call.1} parent=11 // pred_fallthru
          _
        // Predicated region
        $region17: #{tpu_custom_call.1} parent=11 // pred_check
          %p149 = pneg %p97
        $region18: #{tpu_custom_call.1} parent=11 // pred_check_branch
          %151 = sbr.rel (%p149) target = $region20
        $region19: #{tpu_custom_call.1} parent=11 // pred_region
          _
        $region20: #{tpu_custom_call.1} parent=11 // pred_fallthru
          _
      $region12: #{tpu_custom_call.1} parent=5 // pred_fallthru
        _
      %p152 = scmp.lt.s32.totalorder %s12, 2
      // Predicated region
      $region21: #{tpu_custom_call.1} parent=5 // pred_check
        %p153 = pneg %p152
      $region22: #{tpu_custom_call.1} parent=5 // pred_check_branch
        %155 = sbr.rel (%p153) target = $region24
      $region23: #{tpu_custom_call.1} parent=5 // pred_region
        // Predicated region
        $region25: #{tpu_custom_call.1} parent=23 // pred_check
          %p156 = pneg %p44
        $region26: #{tpu_custom_call.1} parent=23 // pred_check_branch
          %158 = sbr.rel (%p156) target = $region28
        $region27: #{tpu_custom_call.1} parent=23 // pred_region
          %s159 = smul.u32 4, %s19
          %p160 = scmp.lt.s32.totalorder %s159, 7
          %s161 = scalar_select %p160, %s159, 7
          %s162 = smul.addr %s161, 2
          %s163 = smul.addr %s162, 8
          %s164 = scalar_lea.vmem %s0, %s163
          %s165 = smul.u32 4, %s19
        $region28: #{tpu_custom_call.1} parent=23 // pred_fallthru
          _
      $region24: #{tpu_custom_call.1} parent=5 // pred_fallthru
        _
      %p166 = scmp.le.s32.totalorder 1, %s12
      %p167 = scmp.lt.s32.totalorder %s12, 3
      %p168 = pnand %p166, %p167
      %p169 = pneg %p168
      // Predicated region
      $region29: #{tpu_custom_call.1} parent=5 // pred_check
        _
      $region30: #{tpu_custom_call.1} parent=5 // pred_check_branch
        %171 = sbr.rel (%p168) target = $region32
      $region31: #{tpu_custom_call.1} parent=5 // pred_region
        %s172 = ssub.s32 %s12, 1
        %s173 = smul.u32 4, %s21
        %p174 = scmp.lt.s32.totalorder %s173, 7
        %s175 = scalar_select %p174, %s173, 7
        %s176 = smul.addr %s175, 2
        %s177 = smul.addr %s176, 8
        %s178 = scalar_lea.vmem %s0, %s177
        %p179 = pneg %p50
        %p180 = pneg %p47
        %s181 = smul.u32 2, %s22
        %p182 = scmp.lt.s32.totalorder %s181, 1
        %s183 = scalar_select %p182, %s181, 1
        %s184 = smul.addr %s183, 8
        %s185 = scalar_lea.vmem %s1, %s184
        %p186 = pneg %p76
        %p187 = pneg %p73
        %p188 = pneg %p97
        %p189 = pneg %p94
        %p190 = pneg %p125
        %p191 = pneg %p122
        %s192 = sand.u32 %s112, 1
        %s193 = scalar_lea.sflag [#allocation3], %s192
        %s194 = sand.u32 %s112, 1
        %s195 = smul.addr %s194, 64
        %s196 = scalar_lea.vmem [#allocation2], %s195
        %s197 = smul.u32 4, %s21
        %p198 = scmp.lt.s32.totalorder %s197, 7
        %s199 = scalar_select %p198, %s197, 7
        %s200 = smul.addr %s199, 2
        %s201 = smul.addr %s200, 8
        %s202 = scalar_lea.vmem %s0, %s201
        %s203 = smul.u32 4, %s21
        %s204 = smul.u32 2, %s22
        %p205 = scmp.lt.s32.totalorder %s204, 1
        %s206 = scalar_select %p205, %s204, 1
        %s207 = smul.addr %s206, 8
        %s208 = scalar_lea.vmem %s1, %s207
        %s209 = smul.u32 2, %s22
        %s210 = smul.u32 4, %s21
        %s211 = smul.u32 2, %s22
        %v212 = vld [vmem:[%s202] sm:$0xff]
        %v213 = vld [vmem:[%s202 + $0x8] sm:$0xff]
        %v214 = vld [vmem:[%s202 + $0x10] sm:$0xff]
        %v215 = vld [vmem:[%s202 + $0x18] sm:$0xff]
        %v216 = vld [vmem:[%s202 + $0x20] sm:$0xff]
        %v217 = vld [vmem:[%s202 + $0x28] sm:$0xff]
        %v218 = vld [vmem:[%s202 + $0x30] sm:$0xff]
        %v219 = vld [vmem:[%s202 + $0x38] sm:$0xff]
        %v220 = vld [vmem:[%s208] sm:$0xff]
        %v221 = vld [vmem:[%s208 + $0x8] sm:$0xff]
        %v222 = vld [vmem:[%s2] sm:$0xff]
        %v223 = vld [vmem:[%s2 + $0x8] sm:$0xf]
        %vm224 = vcmask 130048
        %v226 = vsel %vm224, %v220, 0
        %v229 = vsel %vm224, %v221, 0
        %231 = vmatprep.subr.mxu0 0.0
        %232 = vmatpush1.msra.mxu0 %v212
        %233 = vmatprep.subr.mxu0 0.0
        %234 = vmatpush1.msra.mxu0 %v213
        %235 = vmatprep.subr.mxu0 0.0
        %236 = vmatpush1.msra.mxu0 0.0
        %237 = vmatprep.subr.mxu0 0.0
        %238 = vmatpush1.msra.mxu0 0.0
        %239 = vmatprep.subr.mxu0 0.0
        %240 = vmatpush1.msra.mxu0 0.0
        %241 = vmatprep.subr.mxu0 0.0
        %242 = vmatpush1.msra.mxu0 0.0
        %243 = vmatprep.subr.mxu0 0.0
        %244 = vmatpush1.msra.mxu0 0.0
        %245 = vmatprep.subr.mxu0 0.0
        %246 = vmatpush1.msra.mxu0 0.0
        %247 = vmatprep.subr.mxu0 0.0
        %248 = vmatpush1.msra.mxu0 0.0
        %249 = vmatprep.subr.mxu0 0.0
        %250 = vmatpush1.msra.mxu0 0.0
        %251 = vmatprep.subr.mxu0 0.0
        %252 = vmatpush1.msra.mxu0 0.0
        %253 = vmatprep.subr.mxu0 0.0
        %254 = vmatpush1.msra.mxu0 0.0
        %255 = vmatprep.subr.mxu0 0.0
        %256 = vmatpush1.msra.mxu0 0.0
        %257 = vmatprep.subr.mxu0 0.0
        %258 = vmatpush1.msra.mxu0 0.0
        %259 = vmatprep.subr.mxu0 0.0
        %260 = vmatpush1.msra.mxu0 0.0
        %261 = vmatprep.subr.mxu0 0.0
        %262 = vmatpush1.msra.mxu0 0.0
        %263 = vmatprep.subr.mxu0 0.0
        %264 = vmatpush1.msra.mxu0 0.0
        %265 = vmatprep.subr.mxu0 0.0
        %266 = vmatpush1.msra.mxu0 0.0
        %267 = vmatprep.subr.mxu0 0.0
        %268 = vmatpush1.msra.mxu0 0.0
        %269 = vmatprep.subr.mxu0 0.0
        %270 = vmatpush1.msra.mxu0 0.0
        %271 = vmatprep.subr.mxu0 0.0
        %272 = vmatpush1.msra.mxu0 0.0
        %273 = vmatprep.subr.mxu0 0.0
        %274 = vmatpush1.msra.mxu0 0.0
        %275 = vmatprep.subr.mxu0 0.0
        %276 = vmatpush1.msra.mxu0 0.0
        %277 = vmatprep.subr.mxu0 0.0
        %278 = vmatpush1.msra.mxu0 0.0
        %279 = vmatprep.subr.mxu0 0.0
        %280 = vmatpush1.msra.mxu0 0.0
        %281 = vmatprep.subr.mxu0 0.0
        %282 = vmatpush1.msra.mxu0 0.0
        %283 = vmatprep.subr.mxu0 0.0
        %284 = vmatpush1.msra.mxu0 0.0
        %285 = vmatprep.subr.mxu0 0.0
        %286 = vmatpush1.msra.mxu0 0.0
        %287 = vmatprep.subr.mxu0 0.0
        %288 = vmatpush1.msra.mxu0 0.0
        %289 = vmatprep.subr.mxu0 0.0
        %290 = vmatpush1.msra.mxu0 0.0
        %291 = vmatprep.subr.mxu0 0.0
        %292 = vmatpush1.msra.mxu0 0.0
        %293 = vmatprep.subr.mxu0 0.0
        %294 = vmatpush1.msra.mxu0 0.0
        %295 = vmatprep.mubr.f32.mxu0 0.0
        %296 = vmatmul.mubr.f32.gmra.mrb[0].mxu0 %v226
        %v297 = vpop.f32.mrb[0].mxu0
        %v298 = vadd.f32 0.0, %v297
        %v299 = vpop.f32.mrb[0].mxu0
        %300 = vmatprep.mubr.f32.mxu0 0.0
        %301 = vmatmul.mubr.f32.gmra.mrb[0].mxu0 %v229
        %v302 = vpop.f32.mrb[0].mxu0
        %v303 = vadd.f32 0.0, %v302
        %v304 = vpop.f32.mrb[0].mxu0
        %305 = vdwg.mxu0
        %306 = vmatprep.subr.mxu0 0.0
        %307 = vmatpush1.msra.mxu0 %v214
        %308 = vmatprep.subr.mxu0 0.0
        %309 = vmatpush1.msra.mxu0 %v215
        %310 = vmatprep.subr.mxu0 0.0
        %311 = vmatpush1.msra.mxu0 0.0
        %312 = vmatprep.subr.mxu0 0.0
        %313 = vmatpush1.msra.mxu0 0.0
        %314 = vmatprep.subr.mxu0 0.0
        %315 = vmatpush1.msra.mxu0 0.0
        %316 = vmatprep.subr.mxu0 0.0
        %317 = vmatpush1.msra.mxu0 0.0
        %318 = vmatprep.subr.mxu0 0.0
        %319 = vmatpush1.msra.mxu0 0.0
        %320 = vmatprep.subr.mxu0 0.0
        %321 = vmatpush1.msra.mxu0 0.0
        %322 = vmatprep.subr.mxu0 0.0
        %323 = vmatpush1.msra.mxu0 0.0
        %324 = vmatprep.subr.mxu0 0.0
        %325 = vmatpush1.msra.mxu0 0.0
        %326 = vmatprep.subr.mxu0 0.0
        %327 = vmatpush1.msra.mxu0 0.0
        %328 = vmatprep.subr.mxu0 0.0
        %329 = vmatpush1.msra.mxu0 0.0
        %330 = vmatprep.subr.mxu0 0.0
        %331 = vmatpush1.msra.mxu0 0.0
        %332 = vmatprep.subr.mxu0 0.0
        %333 = vmatpush1.msra.mxu0 0.0
        %334 = vmatprep.subr.mxu0 0.0
        %335 = vmatpush1.msra.mxu0 0.0
        %336 = vmatprep.subr.mxu0 0.0
        %337 = vmatpush1.msra.mxu0 0.0
        %338 = vmatprep.subr.mxu0 0.0
        %339 = vmatpush1.msra.mxu0 0.0
        %340 = vmatprep.subr.mxu0 0.0
        %341 = vmatpush1.msra.mxu0 0.0
        %342 = vmatprep.subr.mxu0 0.0
        %343 = vmatpush1.msra.mxu0 0.0
        %344 = vmatprep.subr.mxu0 0.0
        %345 = vmatpush1.msra.mxu0 0.0
        %346 = vmatprep.subr.mxu0 0.0
        %347 = vmatpush1.msra.mxu0 0.0
        %348 = vmatprep.subr.mxu0 0.0
        %349 = vmatpush1.msra.mxu0 0.0
        %350 = vmatprep.subr.mxu0 0.0
        %351 = vmatpush1.msra.mxu0 0.0
        %352 = vmatprep.subr.mxu0 0.0
        %353 = vmatpush1.msra.mxu0 0.0
        %354 = vmatprep.subr.mxu0 0.0
        %355 = vmatpush1.msra.mxu0 0.0
        %356 = vmatprep.subr.mxu0 0.0
        %357 = vmatpush1.msra.mxu0 0.0
        %358 = vmatprep.subr.mxu0 0.0
        %359 = vmatpush1.msra.mxu0 0.0
        %360 = vmatprep.subr.mxu0 0.0
        %361 = vmatpush1.msra.mxu0 0.0
        %362 = vmatprep.subr.mxu0 0.0
        %363 = vmatpush1.msra.mxu0 0.0
        %364 = vmatprep.subr.mxu0 0.0
        %365 = vmatpush1.msra.mxu0 0.0
        %366 = vmatprep.subr.mxu0 0.0
        %367 = vmatpush1.msra.mxu0 0.0
        %368 = vmatprep.subr.mxu0 0.0
        %369 = vmatpush1.msra.mxu0 0.0
        %370 = vmatprep.mubr.f32.mxu0 0.0
        %371 = vmatmul.mubr.f32.gmra.mrb[0].mxu0 %v226
        %v372 = vpop.f32.mrb[0].mxu0
        %v373 = vadd.f32 0.0, %v372
        %v374 = vpop.f32.mrb[0].mxu0
        %375 = vmatprep.mubr.f32.mxu0 0.0
        %376 = vmatmul.mubr.f32.gmra.mrb[0].mxu0 %v229
        %v377 = vpop.f32.mrb[0].mxu0
        %v378 = vadd.f32 0.0, %v377
        %v379 = vpop.f32.mrb[0].mxu0
        %380 = vdwg.mxu0
        %381 = vmatprep.subr.mxu0 0.0
        %382 = vmatpush1.msra.mxu0 %v216
        %383 = vmatprep.subr.mxu0 0.0
        %384 = vmatpush1.msra.mxu0 %v217
        %385 = vmatprep.subr.mxu0 0.0
        %386 = vmatpush1.msra.mxu0 0.0
        %387 = vmatprep.subr.mxu0 0.0
        %388 = vmatpush1.msra.mxu0 0.0
        %389 = vmatprep.subr.mxu0 0.0
        %390 = vmatpush1.msra.mxu0 0.0
        %391 = vmatprep.subr.mxu0 0.0
        %392 = vmatpush1.msra.mxu0 0.0
        %393 = vmatprep.subr.mxu0 0.0
        %394 = vmatpush1.msra.mxu0 0.0
        %395 = vmatprep.subr.mxu0 0.0
        %396 = vmatpush1.msra.mxu0 0.0
        %397 = vmatprep.subr.mxu0 0.0
        %398 = vmatpush1.msra.mxu0 0.0
        %399 = vmatprep.subr.mxu0 0.0
        %400 = vmatpush1.msra.mxu0 0.0
        %401 = vmatprep.subr.mxu0 0.0
        %402 = vmatpush1.msra.mxu0 0.0
        %403 = vmatprep.subr.mxu0 0.0
        %404 = vmatpush1.msra.mxu0 0.0
        %405 = vmatprep.subr.mxu0 0.0
        %406 = vmatpush1.msra.mxu0 0.0
        %407 = vmatprep.subr.mxu0 0.0
        %408 = vmatpush1.msra.mxu0 0.0
        %409 = vmatprep.subr.mxu0 0.0
        %410 = vmatpush1.msra.mxu0 0.0
        %411 = vmatprep.subr.mxu0 0.0
        %412 = vmatpush1.msra.mxu0 0.0
        %413 = vmatprep.subr.mxu0 0.0
        %414 = vmatpush1.msra.mxu0 0.0
        %415 = vmatprep.subr.mxu0 0.0
        %416 = vmatpush1.msra.mxu0 0.0
        %417 = vmatprep.subr.mxu0 0.0
        %418 = vmatpush1.msra.mxu0 0.0
        %419 = vmatprep.subr.mxu0 0.0
        %420 = vmatpush1.msra.mxu0 0.0
        %421 = vmatprep.subr.mxu0 0.0
        %422 = vmatpush1.msra.mxu0 0.0
        %423 = vmatprep.subr.mxu0 0.0
        %424 = vmatpush1.msra.mxu0 0.0
        %425 = vmatprep.subr.mxu0 0.0
        %426 = vmatpush1.msra.mxu0 0.0
        %427 = vmatprep.subr.mxu0 0.0
        %428 = vmatpush1.msra.mxu0 0.0
        %429 = vmatprep.subr.mxu0 0.0
        %430 = vmatpush1.msra.mxu0 0.0
        %431 = vmatprep.subr.mxu0 0.0
        %432 = vmatpush1.msra.mxu0 0.0
        %433 = vmatprep.subr.mxu0 0.0
        %434 = vmatpush1.msra.mxu0 0.0
        %435 = vmatprep.subr.mxu0 0.0
        %436 = vmatpush1.msra.mxu0 0.0
        %437 = vmatprep.subr.mxu0 0.0
        %438 = vmatpush1.msra.mxu0 0.0
        %439 = vmatprep.subr.mxu0 0.0
        %440 = vmatpush1.msra.mxu0 0.0
        %441 = vmatprep.subr.mxu0 0.0
        %442 = vmatpush1.msra.mxu0 0.0
        %443 = vmatprep.subr.mxu0 0.0
        %444 = vmatpush1.msra.mxu0 0.0
        %445 = vmatprep.mubr.f32.mxu0 0.0
        %446 = vmatmul.mubr.f32.gmra.mrb[0].mxu0 %v226
        %v447 = vpop.f32.mrb[0].mxu0
        %v448 = vadd.f32 0.0, %v447
        %v449 = vpop.f32.mrb[0].mxu0
        %450 = vmatprep.mubr.f32.mxu0 0.0
        %451 = vmatmul.mubr.f32.gmra.mrb[0].mxu0 %v229
        %v452 = vpop.f32.mrb[0].mxu0
        %v453 = vadd.f32 0.0, %v452
        %v454 = vpop.f32.mrb[0].mxu0
        %455 = vdwg.mxu0
        %456 = vmatprep.subr.mxu0 0.0
        %457 = vmatpush1.msra.mxu0 %v218
        %458 = vmatprep.subr.mxu0 0.0
        %459 = vmatpush1.msra.mxu0 %v219
        %460 = vmatprep.subr.mxu0 0.0
        %461 = vmatpush1.msra.mxu0 0.0
        %462 = vmatprep.subr.mxu0 0.0
        %463 = vmatpush1.msra.mxu0 0.0
        %464 = vmatprep.subr.mxu0 0.0
        %465 = vmatpush1.msra.mxu0 0.0
        %466 = vmatprep.subr.mxu0 0.0
        %467 = vmatpush1.msra.mxu0 0.0
        %468 = vmatprep.subr.mxu0 0.0
        %469 = vmatpush1.msra.mxu0 0.0
        %470 = vmatprep.subr.mxu0 0.0
        %471 = vmatpush1.msra.mxu0 0.0
        %472 = vmatprep.subr.mxu0 0.0
        %473 = vmatpush1.msra.mxu0 0.0
        %474 = vmatprep.subr.mxu0 0.0
        %475 = vmatpush1.msra.mxu0 0.0
        %476 = vmatprep.subr.mxu0 0.0
        %477 = vmatpush1.msra.mxu0 0.0
        %478 = vmatprep.subr.mxu0 0.0
        %479 = vmatpush1.msra.mxu0 0.0
        %480 = vmatprep.subr.mxu0 0.0
        %481 = vmatpush1.msra.mxu0 0.0
        %482 = vmatprep.subr.mxu0 0.0
        %483 = vmatpush1.msra.mxu0 0.0
        %484 = vmatprep.subr.mxu0 0.0
        %485 = vmatpush1.msra.mxu0 0.0
        %486 = vmatprep.subr.mxu0 0.0
        %487 = vmatpush1.msra.mxu0 0.0
        %488 = vmatprep.subr.mxu0 0.0
        %489 = vmatpush1.msra.mxu0 0.0
        %490 = vmatprep.subr.mxu0 0.0
        %491 = vmatpush1.msra.mxu0 0.0
        %492 = vmatprep.subr.mxu0 0.0
        %493 = vmatpush1.msra.mxu0 0.0
        %494 = vmatprep.subr.mxu0 0.0
        %495 = vmatpush1.msra.mxu0 0.0
        %496 = vmatprep.subr.mxu0 0.0
        %497 = vmatpush1.msra.mxu0 0.0
        %498 = vmatprep.subr.mxu0 0.0
        %499 = vmatpush1.msra.mxu0 0.0
        %500 = vmatprep.subr.mxu0 0.0
        %501 = vmatpush1.msra.mxu0 0.0
        %502 = vmatprep.subr.mxu0 0.0
        %503 = vmatpush1.msra.mxu0 0.0
        %504 = vmatprep.subr.mxu0 0.0
        %505 = vmatpush1.msra.mxu0 0.0
        %506 = vmatprep.subr.mxu0 0.0
        %507 = vmatpush1.msra.mxu0 0.0
        %508 = vmatprep.subr.mxu0 0.0
        %509 = vmatpush1.msra.mxu0 0.0
        %510 = vmatprep.subr.mxu0 0.0
        %511 = vmatpush1.msra.mxu0 0.0
        %512 = vmatprep.subr.mxu0 0.0
        %513 = vmatpush1.msra.mxu0 0.0
        %514 = vmatprep.subr.mxu0 0.0
        %515 = vmatpush1.msra.mxu0 0.0
        %516 = vmatprep.subr.mxu0 0.0
        %517 = vmatpush1.msra.mxu0 0.0
        %518 = vmatprep.subr.mxu0 0.0
        %519 = vmatpush1.msra.mxu0 0.0
        %520 = vmatprep.mubr.f32.mxu0 0.0
        %521 = vmatmul.mubr.f32.gmra.mrb[0].mxu0 %v226
        %v522 = vpop.f32.mrb[0].mxu0
        %v523 = vadd.f32 0.0, %v522
        %v524 = vpop.f32.mrb[0].mxu0
        %525 = vmatprep.mubr.f32.mxu0 0.0
        %526 = vmatmul.mubr.f32.gmra.mrb[0].mxu0 %v229
        %v527 = vpop.f32.mrb[0].mxu0
        %v528 = vadd.f32 0.0, %v527
        %v529 = vpop.f32.mrb[0].mxu0
        %530 = vdwg.mxu0
        %vm531 = vcmask 97280
        %v533 = vsel %vm531, %v298, 0
        %v536 = vsel %vm531, %v303, 0
        %v539 = vsel %vm531, %v373, 0
        %v542 = vsel %vm531, %v378, 0
        %v545 = vsel %vm531, %v448, 0
        %v548 = vsel %vm531, %v453, 0
        %v551 = vsel %vm531, %v523, 0
        %v554 = vsel %vm531, %v528, 0
        %vm556 = vcmask 1043456
        %v558 = vsel %vm556, %v223, 0
        %560 = vmatprep.subr.mxu0 0.0
        %561 = vmatpush1.msra.mxu0 %v222
        %562 = vmatprep.subr.mxu0 0.0
        %563 = vmatpush1.msra.mxu0 %v558
        %564 = vmatprep.subr.mxu0 0.0
        %565 = vmatpush1.msra.mxu0 0.0
        %566 = vmatprep.subr.mxu0 0.0
        %567 = vmatpush1.msra.mxu0 0.0
        %568 = vmatprep.subr.mxu0 0.0
        %569 = vmatpush1.msra.mxu0 0.0
        %570 = vmatprep.subr.mxu0 0.0
        %571 = vmatpush1.msra.mxu0 0.0
        %572 = vmatprep.subr.mxu0 0.0
        %573 = vmatpush1.msra.mxu0 0.0
        %574 = vmatprep.subr.mxu0 0.0
        %575 = vmatpush1.msra.mxu0 0.0
        %576 = vmatprep.subr.mxu0 0.0
        %577 = vmatpush1.msra.mxu0 0.0
        %578 = vmatprep.subr.mxu0 0.0
        %579 = vmatpush1.msra.mxu0 0.0
        %580 = vmatprep.subr.mxu0 0.0
        %581 = vmatpush1.msra.mxu0 0.0
        %582 = vmatprep.subr.mxu0 0.0
        %583 = vmatpush1.msra.mxu0 0.0
        %584 = vmatprep.subr.mxu0 0.0
        %585 = vmatpush1.msra.mxu0 0.0
        %586 = vmatprep.subr.mxu0 0.0
        %587 = vmatpush1.msra.mxu0 0.0
        %588 = vmatprep.subr.mxu0 0.0
        %589 = vmatpush1.msra.mxu0 0.0
        %590 = vmatprep.subr.mxu0 0.0
        %591 = vmatpush1.msra.mxu0 0.0
        %592 = vmatprep.subr.mxu0 0.0
        %593 = vmatpush1.msra.mxu0 0.0
        %594 = vmatprep.subr.mxu0 0.0
        %595 = vmatpush1.msra.mxu0 0.0
        %596 = vmatprep.subr.mxu0 0.0
        %597 = vmatpush1.msra.mxu0 0.0
        %598 = vmatprep.subr.mxu0 0.0
        %599 = vmatpush1.msra.mxu0 0.0
        %600 = vmatprep.subr.mxu0 0.0
        %601 = vmatpush1.msra.mxu0 0.0
        %602 = vmatprep.subr.mxu0 0.0
        %603 = vmatpush1.msra.mxu0 0.0
        %604 = vmatprep.subr.mxu0 0.0
        %605 = vmatpush1.msra.mxu0 0.0
        %606 = vmatprep.subr.mxu0 0.0
        %607 = vmatpush1.msra.mxu0 0.0
        %608 = vmatprep.subr.mxu0 0.0
        %609 = vmatpush1.msra.mxu0 0.0
        %610 = vmatprep.subr.mxu0 0.0
        %611 = vmatpush1.msra.mxu0 0.0
        %612 = vmatprep.subr.mxu0 0.0
        %613 = vmatpush1.msra.mxu0 0.0
        %614 = vmatprep.subr.mxu0 0.0
        %615 = vmatpush1.msra.mxu0 0.0
        %616 = vmatprep.subr.mxu0 0.0
        %617 = vmatpush1.msra.mxu0 0.0
        %618 = vmatprep.subr.mxu0 0.0
        %619 = vmatpush1.msra.mxu0 0.0
        %620 = vmatprep.subr.mxu0 0.0
        %621 = vmatpush1.msra.mxu0 0.0
        %622 = vmatprep.subr.mxu0 0.0
        %623 = vmatpush1.msra.mxu0 0.0
        %624 = vmatprep.mubr.f32.mxu0 0.0
        %625 = vmatmul.mubr.f32.gmra.mrb[0].mxu0 %v533
        %v626 = vpop.f32.mrb[0].mxu0
        %v627 = vadd.f32 0.0, %v626
        %v628 = vpop.f32.mrb[0].mxu0
        %629 = vmatprep.mubr.f32.mxu0 0.0
        %630 = vmatmul.mubr.f32.gmra.mrb[0].mxu0 %v536
        %v631 = vpop.f32.mrb[0].mxu0
        %v632 = vadd.f32 0.0, %v631
        %v633 = vpop.f32.mrb[0].mxu0
        %634 = vmatprep.mubr.f32.mxu0 0.0
        %635 = vmatmul.mubr.f32.gmra.mrb[0].mxu0 %v539
        %v636 = vpop.f32.mrb[0].mxu0
        %v637 = vadd.f32 0.0, %v636
        %v638 = vpop.f32.mrb[0].mxu0
        %639 = vmatprep.mubr.f32.mxu0 0.0
        %640 = vmatmul.mubr.f32.gmra.mrb[0].mxu0 %v542
        %v641 = vpop.f32.mrb[0].mxu0
        %v642 = vadd.f32 0.0, %v641
        %v643 = vpop.f32.mrb[0].mxu0
        %644 = vmatprep.mubr.f32.mxu0 0.0
        %645 = vmatmul.mubr.f32.gmra.mrb[0].mxu0 %v545
        %v646 = vpop.f32.mrb[0].mxu0
        %v647 = vadd.f32 0.0, %v646
        %v648 = vpop.f32.mrb[0].mxu0
        %649 = vmatprep.mubr.f32.mxu0 0.0
        %650 = vmatmul.mubr.f32.gmra.mrb[0].mxu0 %v548
        %v651 = vpop.f32.mrb[0].mxu0
        %v652 = vadd.f32 0.0, %v651
        %v653 = vpop.f32.mrb[0].mxu0
        %654 = vmatprep.mubr.f32.mxu0 0.0
        %655 = vmatmul.mubr.f32.gmra.mrb[0].mxu0 %v551
        %v656 = vpop.f32.mrb[0].mxu0
        %v657 = vadd.f32 0.0, %v656
        %v658 = vpop.f32.mrb[0].mxu0
        %659 = vmatprep.mubr.f32.mxu0 0.0
        %660 = vmatmul.mubr.f32.gmra.mrb[0].mxu0 %v554
        %v661 = vpop.f32.mrb[0].mxu0
        %v662 = vadd.f32 0.0, %v661
        %v663 = vpop.f32.mrb[0].mxu0
        %664 = vdwg.mxu0
        %665 = vst [vmem:[%s196] sm:$0xff] %v627
        %666 = vst [vmem:[%s196 + $0x8] sm:$0xff] %v632
        %667 = vst [vmem:[%s196 + $0x10] sm:$0xff] %v637
        %668 = vst [vmem:[%s196 + $0x18] sm:$0xff] %v642
        %669 = vst [vmem:[%s196 + $0x20] sm:$0xff] %v647
        %670 = vst [vmem:[%s196 + $0x28] sm:$0xff] %v652
        %671 = vst [vmem:[%s196 + $0x30] sm:$0xff] %v657
        %672 = vst [vmem:[%s196 + $0x38] sm:$0xff] %v662
        %s673 = sand.u32 %s112, 1
        %s674 = scalar_lea.sflag [#allocation3], %s673
        %s675 = sand.u32 %s112, 1
        %s676 = smul.addr %s675, 64
        %s677 = scalar_lea.vmem [#allocation2], %s676
        // Predicated region
        $region33: #{tpu_custom_call.1} parent=31 // pred_check
          %p678 = pneg %p122
        $region34: #{tpu_custom_call.1} parent=31 // pred_check_branch
          %680 = sbr.rel (%p678) target = $region36
        $region35: #{tpu_custom_call.1} parent=31 // pred_region
          %s681 = smul.u32 4, %s21
          %s682 = smul.u32 2, %s22
          %s684 = ssub.s32 1024, 1024
          %685 = vsyncadd %s674, %s684
          %s686 = smul.addr %s681, 2
          %s687 = sadd.s32 %s682, %s686
          %s688 = smul.addr %s687, 128
          %s689 = scalar_lea.hbm %s3, %s688
          %s690 = sshll.u32 %s677, 4
          %s691 = int_to_ptr.vmem [resolvable:$true] %s690
          %696 = dma.vmem_to_hbm [thread:$0]  %s691, 1024, %s689, %s674, 128, 128, 8
        $region36: #{tpu_custom_call.1} parent=31 // pred_fallthru
          _
      $region32: #{tpu_custom_call.1} parent=5 // pred_fallthru
        _
      %p697 = scmp.le.s32.totalorder 2, %s12
      // Predicated region
      $region37: #{tpu_custom_call.1} parent=5 // pred_check
        %p698 = pneg %p697
      $region38: #{tpu_custom_call.1} parent=5 // pred_check_branch
        %700 = sbr.rel (%p698) target = $region40
      $region39: #{tpu_custom_call.1} parent=5 // pred_region
        %s701 = ssub.s32 %s12, 2
        // Predicated region
        $region41: #{tpu_custom_call.1} parent=39 // pred_check
          %p702 = pneg %p128
        $region42: #{tpu_custom_call.1} parent=39 // pred_check_branch
          %704 = sbr.rel (%p702) target = $region44
        $region43: #{tpu_custom_call.1} parent=39 // pred_region
          %s705 = sand.u32 %s113, 1
          %s706 = scalar_lea.sflag [#allocation3], %s705
          %s707 = sand.u32 %s113, 1
          %s708 = smul.addr %s707, 64
          %s709 = scalar_lea.vmem [#allocation2], %s708
          %710 = dma.done %s706, 1024
        $region44: #{tpu_custom_call.1} parent=39 // pred_fallthru
          _
      $region40: #{tpu_custom_call.1} parent=5 // pred_fallthru
        _
    $region6: #{tpu_custom_call.1} parent=1 // loop_footer
      %s16 = sadd.s32 1, %s12
    $region7: #{tpu_custom_call.1} parent=1 // loop_footer_branch
      %11 = sbr.rel target = $region3
    $region8: #{tpu_custom_call.1} parent=1 // loop_exit
      _
    %711 = vsyncpa [#allocation3], 1
    %s712 = scalar_lea.sflag [#allocation3], 1
    %713 = vsyncpa %s712, 1

// kernel: tpu_custom_call.1
$region0: #{tpu_custom_call.1}
  #allocation0 [shape = 'u32[]', space=smem, size = 0x4, offset = 0x4, fixed_abs, tag = 'smem constant byte address 0x4 - core index']
  #allocation1 [shape = 'u32[144,128]{1,0:T(1,128)}', space=vmem, size = 0x12000, scoped, tag = 'internal scratch']
  %s0 = inlined_call_operand.vmem [shape: f32[8,16,12], index: 0, kind: input, shape index: {}]
  %s1 = inlined_call_operand.vmem [shape: f32[16,16], index: 1, kind: input, shape index: {}]
  %s2 = inlined_call_operand.vmem [shape: f32[12,128], index: 2, kind: input, shape index: {}]
  %s3 = inlined_call_operand.hbm [shape: f32[8,16,128], index: 3, kind: output, shape index: {}]
  %s4 = sld [smem:[#allocation0]]
  $region45: #{tpu_custom_call.1} parent=0
    _
  %s6 = ssub.s32 1, %s4
  %s7 = scalar_select 0, %s6, %s4
  $region1: #{tpu_custom_call.1} parent=0
    #allocation2 [shape = 'u8[65536]{0}', space=vmem, size = 0x10000, scoped, tag = 'output window, operand 0']
    #allocation3 [shape = 's32[2]{0}', space=sflag, size = 0x8, scoped, tag = 'scoped memory for tpu_custom_call.1']
    %8 = vsyncpa [#allocation3], 0
    %s9 = scalar_lea.sflag [#allocation3], 1
    %10 = vsyncpa %s9, 0
    loop: start=0, step=1, limit=4
    $region2: #{tpu_custom_call.1} parent=1 // loop_pre_header
      _
    $region3: #{tpu_custom_call.1} parent=1 // loop_header
      %s12 = sphi 0, %s16
      %p13 = scmp.ge.s32.totalorder %s12, 4
      %s19 = sphi 0, %s31
      %s20 = sphi 0, %s27
      %s21 = sphi 0, %s19
      %s22 = sphi 0, %s20
      %s23 = sphi 0, %s21
      %s24 = sphi 0, %s22
      %s34 = sphi 0, %s36
      %s37 = sphi 0, %s34
      %s38 = sphi 0, %s37
      %s54 = sphi 0, %s38
      %s60 = sphi 0, %s62
      %s63 = sphi 0, %s60
      %s64 = sphi 0, %s63
      %s80 = sphi 0, %s64
      %s84 = sphi 0, %s84
      %s86 = sphi 0, %s84
      %s87 = sphi 0, %s86
      %s101 = sphi 0, %s87
      %s109 = sphi 0, %s111
      %s112 = sphi 0, %s109
      %s113 = sphi 0, %s112
      %s129 = sphi 0, %s113
    $region4: #{tpu_custom_call.1} parent=1 // loop_header_branch
      %15 = sbr.rel (%p13) target = $region8
    $region5: #{tpu_custom_call.1} parent=1 // loop_body
      %s17 = ssub.s32 %s12, 1
      %s18 = ssub.s32 %s12, 2
      %s25 = sadd.s32 1, %s20
      %p26 = scmp.ge.s32.totalorder %s25, 1
      %s27 = scalar_select %p26, 0, %s25
      %s28 = sadd.s32 1, %s19
      %s29 = scalar_select %p26, %s28, %s19
      %p30 = scmp.ge.s32.totalorder %s29, 2
      %s31 = scalar_select %p30, 0, %s29
      %s32 = ssub.s32 %s19, %s31
      %p33 = scmp.eq.s32.totalorder %s32, 0
      %s35 = sadd.s32 %s34, 1
      %s36 = scalar_select %p33, %s34, %s35
      %p39 = pneg %p33
      %p40 = scmp.eq.s32.totalorder %s12, 1
      %p41 = por %p39, %p40
      %p42 = scmp.ne.s32.totalorder %s34, %s37
      %p43 = scmp.eq.s32.totalorder %s12, 0
      %p44 = por %p42, %p43
      %p45 = scmp.ne.s32.totalorder %s34, %s37
      %p46 = scmp.eq.s32.totalorder %s17, 1
      %p47 = por %p45, %p46
      %p48 = scmp.ne.s32.totalorder %s37, %s38
      %p49 = scmp.eq.s32.totalorder %s17, 0
      %p50 = por %p48, %p49
      %p51 = scmp.ne.s32.totalorder %s37, %s38
      %p52 = scmp.eq.s32.totalorder %s18, 1
      %p53 = por %p51, %p52
      %p55 = scmp.ne.s32.totalorder %s38, %s54
      %p56 = scmp.eq.s32.totalorder %s18, 0
      %p57 = por %p55, %p56
      %s58 = ssub.s32 %s20, %s27
      %p59 = scmp.eq.s32.totalorder %s58, 0
      %s61 = sadd.s32 %s60, 1
      %s62 = scalar_select %p59, %s60, %s61
      %p65 = pneg %p59
      %p66 = scmp.eq.s32.totalorder %s12, 1
      %p67 = por %p65, %p66
      %p68 = scmp.ne.s32.totalorder %s60, %s63
      %p69 = scmp.eq.s32.totalorder %s12, 0
      %p70 = por %p68, %p69
      %p71 = scmp.ne.s32.totalorder %s60, %s63
      %p72 = scmp.eq.s32.totalorder %s17, 1
      %p73 = por %p71, %p72
      %p74 = scmp.ne.s32.totalorder %s63, %s64
      %p75 = scmp.eq.s32.totalorder %s17, 0
      %p76 = por %p74, %p75
      %p77 = scmp.ne.s32.totalorder %s63, %s64
      %p78 = scmp.eq.s32.totalorder %s18, 1
      %p79 = por %p77, %p78
      %p81 = scmp.ne.s32.totalorder %s64, %s80
      %p82 = scmp.eq.s32.totalorder %s18, 0
      %p83 = por %p81, %p82
      %s85 = sadd.s32 %s84, 1
      %p88 = scmp.eq.s32.totalorder %s12, 1
      %p89 = scmp.ne.s32.totalorder %s84, %s86
      %p90 = scmp.eq.s32.totalorder %s12, 0
      %p91 = por %p89, %p90
      %p92 = scmp.ne.s32.totalorder %s84, %s86
      %p93 = scmp.eq.s32.totalorder %s17, 1
      %p94 = por %p92, %p93
      %p95 = scmp.ne.s32.totalorder %s86, %s87
      %p96 = scmp.eq.s32.totalorder %s17, 0
      %p97 = por %p95, %p96
      %p98 = scmp.ne.s32.totalorder %s86, %s87
      %p99 = scmp.eq.s32.totalorder %s18, 1
      %p100 = por %p98, %p99
      %p102 = scmp.ne.s32.totalorder %s87, %s101
      %p103 = scmp.eq.s32.totalorder %s18, 0
      %p104 = por %p102, %p103
      %s105 = ssub.s32 %s19, %s31
      %s106 = ssub.s32 %s20, %s27
      %s107 = sor.u32 %s105, %s106
      %p108 = scmp.eq.s32.totalorder %s107, 0
      %s110 = sadd.s32 %s109, 1
      %s111 = scalar_select %p108, %s109, %s110
      %p114 = pneg %p108
      %p115 = scmp.eq.s32.totalorder %s12, 1
      %p116 = por %p114, %p115
      %p117 = scmp.ne.s32.totalorder %s109, %s112
      %p118 = scmp.eq.s32.totalorder %s12, 0
      %p119 = por %p117, %p118
      %p120 = scmp.ne.s32.totalorder %s109, %s112
      %p121 = scmp.eq.s32.totalorder %s17, 1
      %p122 = por %p120, %p121
      %p123 = scmp.ne.s32.totalorder %s112, %s113
      %p124 = scmp.eq.s32.totalorder %s17, 0
      %p125 = por %p123, %p124
      %p126 = scmp.ne.s32.totalorder %s112, %s113
      %p127 = scmp.eq.s32.totalorder %s18, 1
      %p128 = por %p126, %p127
      %p130 = scmp.ne.s32.totalorder %s113, %s129
      %p131 = scmp.eq.s32.totalorder %s18, 0
      %p132 = por %p130, %p131
      %p133 = scmp.le.s32.totalorder 1, %s12
      %p134 = scmp.lt.s32.totalorder %s12, 3
      %p135 = pnand %p133, %p134
      %p136 = pneg %p135
      // Predicated region
      $region9: #{tpu_custom_call.1} parent=5 // pred_check
        _
      $region10: #{tpu_custom_call.1} parent=5 // pred_check_branch
        %138 = sbr.rel (%p135) target = $region12
      $region11: #{tpu_custom_call.1} parent=5 // pred_region
        %s139 = ssub.s32 %s12, 1
        // Predicated region
        $region13: #{tpu_custom_call.1} parent=11 // pred_check
          %p140 = pneg %p76
        $region14: #{tpu_custom_call.1} parent=11 // pred_check_branch
          %142 = sbr.rel (%p140) target = $region16
        $region15: #{tpu_custom_call.1} parent=11 // pred_region
          %s143 = smul.u32 2, %s22
          %p144 = scmp.lt.s32.totalorder %s143, 1
          %s145 = scalar_select %p144, %s143, 1
          %s146 = smul.addr %s145, 8
          %s147 = scalar_lea.vmem %s1, %s146
          %s148 = smul.u32 2, %s22
        $region16: #{tpu_custom_call.1} parent=11 // pred_fallthru
          _
        // Predicated region
        $region17: #{tpu_custom_call.1} parent=11 // pred_check
          %p149 = pneg %p97
        $region18: #{tpu_custom_call.1} parent=11 // pred_check_branch
          %151 = sbr.rel (%p149) target = $region20
        $region19: #{tpu_custom_call.1} parent=11 // pred_region
          _
        $region20: #{tpu_custom_call.1} parent=11 // pred_fallthru
          _
      $region12: #{tpu_custom_call.1} parent=5 // pred_fallthru
        _
      %p152 = scmp.lt.s32.totalorder %s12, 2
      // Predicated region
      $region21: #{tpu_custom_call.1} parent=5 // pred_check
        %p153 = pneg %p152
      $region22: #{tpu_custom_call.1} parent=5 // pred_check_branch
        %155 = sbr.rel (%p153) target = $region24
      $region23: #{tpu_custom_call.1} parent=5 // pred_region
        // Predicated region
        $region25: #{tpu_custom_call.1} parent=23 // pred_check
          %p156 = pneg %p44
        $region26: #{tpu_custom_call.1} parent=23 // pred_check_branch
          %158 = sbr.rel (%p156) target = $region28
        $region27: #{tpu_custom_call.1} parent=23 // pred_region
          %s159 = smul.u32 4, %s19
          %p160 = scmp.lt.s32.totalorder %s159, 7
          %s161 = scalar_select %p160, %s159, 7
          %s162 = smul.addr %s161, 2
          %s163 = smul.addr %s162, 8
          %s164 = scalar_lea.vmem %s0, %s163
          %s165 = smul.u32 4, %s19
        $region28: #{tpu_custom_call.1} parent=23 // pred_fallthru
          _
      $region24: #{tpu_custom_call.1} parent=5 // pred_fallthru
        _
      %p166 = scmp.le.s32.totalorder 1, %s12
      %p167 = scmp.lt.s32.totalorder %s12, 3
      %p168 = pnand %p166, %p167
      %p169 = pneg %p168
      // Predicated region
      $region29: #{tpu_custom_call.1} parent=5 // pred_check
        _
      $region30: #{tpu_custom_call.1} parent=5 // pred_check_branch
        %171 = sbr.rel (%p168) target = $region32
      $region31: #{tpu_custom_call.1} parent=5 // pred_region
        %s172 = ssub.s32 %s12, 1
        %s173 = smul.u32 4, %s21
        %p174 = scmp.lt.s32.totalorder %s173, 7
        %s175 = scalar_select %p174, %s173, 7
        %s176 = smul.addr %s175, 2
        %s177 = smul.addr %s176, 8
        %s178 = scalar_lea.vmem %s0, %s177
        %p179 = pneg %p50
        %p180 = pneg %p47
        %s181 = smul.u32 2, %s22
        %p182 = scmp.lt.s32.totalorder %s181, 1
        %s183 = scalar_select %p182, %s181, 1
        %s184 = smul.addr %s183, 8
        %s185 = scalar_lea.vmem %s1, %s184
        %p186 = pneg %p76
        %p187 = pneg %p73
        %p188 = pneg %p97
        %p189 = pneg %p94
        %p190 = pneg %p125
        %p191 = pneg %p122
        %s192 = sand.u32 %s112, 1
        %s193 = scalar_lea.sflag [#allocation3], %s192
        %s194 = sand.u32 %s112, 1
        %s195 = smul.addr %s194, 64
        %s196 = scalar_lea.vmem [#allocation2], %s195
        %s197 = smul.u32 4, %s21
        %p198 = scmp.lt.s32.totalorder %s197, 7
        %s199 = scalar_select %p198, %s197, 7
        %s200 = smul.addr %s199, 2
        %s201 = smul.addr %s200, 8
        %s202 = scalar_lea.vmem %s0, %s201
        %s203 = smul.u32 4, %s21
        %s204 = smul.u32 2, %s22
        %p205 = scmp.lt.s32.totalorder %s204, 1
        %s206 = scalar_select %p205, %s204, 1
        %s207 = smul.addr %s206, 8
        %s208 = scalar_lea.vmem %s1, %s207
        %s209 = smul.u32 2, %s22
        %s210 = smul.u32 4, %s21
        %s211 = smul.u32 2, %s22
        %v212 = vld [vmem:[%s202] sm:$0xff]
        %v213 = vld [vmem:[%s202 + $0x8] sm:$0xff]
        %v214 = vld [vmem:[%s202 + $0x10] sm:$0xff]
        %v215 = vld [vmem:[%s202 + $0x18] sm:$0xff]
        %v216 = vld [vmem:[%s202 + $0x20] sm:$0xff]
        %v217 = vld [vmem:[%s202 + $0x28] sm:$0xff]
        %v218 = vld [vmem:[%s202 + $0x30] sm:$0xff]
        %v219 = vld [vmem:[%s202 + $0x38] sm:$0xff]
        %v220 = vld [vmem:[%s208] sm:$0xff]
        %v221 = vld [vmem:[%s208 + $0x8] sm:$0xff]
        %v222 = vld [vmem:[%s2] sm:$0xff]
        %v223 = vld [vmem:[%s2 + $0x8] sm:$0xf]
        %vm224 = vcmask 130048
        %v226 = vsel %vm224, %v220, 0
        %v229 = vsel %vm224, %v221, 0
        %231 = vmatprep.subr.mxu0 0.0
        %232 = vmatpush1.msra.mxu0 %v212
        %233 = vmatprep.subr.mxu0 0.0
        %234 = vmatpush1.msra.mxu0 %v213
        %235 = vmatprep.subr.mxu0 0.0
        %236 = vmatpush1.msra.mxu0 0.0
        %237 = vmatprep.subr.mxu0 0.0
        %238 = vmatpush1.msra.mxu0 0.0
        %239 = vmatprep.subr.mxu0 0.0
        %240 = vmatpush1.msra.mxu0 0.0
        %241 = vmatprep.subr.mxu0 0.0
        %242 = vmatpush1.msra.mxu0 0.0
        %243 = vmatprep.subr.mxu0 0.0
        %244 = vmatpush1.msra.mxu0 0.0
        %245 = vmatprep.subr.mxu0 0.0
        %246 = vmatpush1.msra.mxu0 0.0
        %247 = vmatprep.subr.mxu0 0.0
        %248 = vmatpush1.msra.mxu0 0.0
        %249 = vmatprep.subr.mxu0 0.0
        %250 = vmatpush1.msra.mxu0 0.0
        %251 = vmatprep.subr.mxu0 0.0
        %252 = vmatpush1.msra.mxu0 0.0
        %253 = vmatprep.subr.mxu0 0.0
        %254 = vmatpush1.msra.mxu0 0.0
        %255 = vmatprep.subr.mxu0 0.0
        %256 = vmatpush1.msra.mxu0 0.0
        %257 = vmatprep.subr.mxu0 0.0
        %258 = vmatpush1.msra.mxu0 0.0
        %259 = vmatprep.subr.mxu0 0.0
        %260 = vmatpush1.msra.mxu0 0.0
        %261 = vmatprep.subr.mxu0 0.0
        %262 = vmatpush1.msra.mxu0 0.0
        %263 = vmatprep.subr.mxu0 0.0
        %264 = vmatpush1.msra.mxu0 0.0
        %265 = vmatprep.subr.mxu0 0.0
        %266 = vmatpush1.msra.mxu0 0.0
        %267 = vmatprep.subr.mxu0 0.0
        %268 = vmatpush1.msra.mxu0 0.0
        %269 = vmatprep.subr.mxu0 0.0
        %270 = vmatpush1.msra.mxu0 0.0
        %271 = vmatprep.subr.mxu0 0.0
        %272 = vmatpush1.msra.mxu0 0.0
        %273 = vmatprep.subr.mxu0 0.0
        %274 = vmatpush1.msra.mxu0 0.0
        %275 = vmatprep.subr.mxu0 0.0
        %276 = vmatpush1.msra.mxu0 0.0
        %277 = vmatprep.subr.mxu0 0.0
        %278 = vmatpush1.msra.mxu0 0.0
        %279 = vmatprep.subr.mxu0 0.0
        %280 = vmatpush1.msra.mxu0 0.0
        %281 = vmatprep.subr.mxu0 0.0
        %282 = vmatpush1.msra.mxu0 0.0
        %283 = vmatprep.subr.mxu0 0.0
        %284 = vmatpush1.msra.mxu0 0.0
        %285 = vmatprep.subr.mxu0 0.0
        %286 = vmatpush1.msra.mxu0 0.0
        %287 = vmatprep.subr.mxu0 0.0
        %288 = vmatpush1.msra.mxu0 0.0
        %289 = vmatprep.subr.mxu0 0.0
        %290 = vmatpush1.msra.mxu0 0.0
        %291 = vmatprep.subr.mxu0 0.0
        %292 = vmatpush1.msra.mxu0 0.0
        %293 = vmatprep.subr.mxu0 0.0
        %294 = vmatpush1.msra.mxu0 0.0
        %295 = vmatprep.mubr.f32.mxu0 0.0
        %296 = vmatmul.mubr.f32.gmra.mrb[0].mxu0 %v226
        %v297 = vpop.f32.mrb[0].mxu0
        %v298 = vadd.f32 0.0, %v297
        %v299 = vpop.f32.mrb[0].mxu0
        %300 = vmatprep.mubr.f32.mxu0 0.0
        %301 = vmatmul.mubr.f32.gmra.mrb[0].mxu0 %v229
        %v302 = vpop.f32.mrb[0].mxu0
        %v303 = vadd.f32 0.0, %v302
        %v304 = vpop.f32.mrb[0].mxu0
        %305 = vdwg.mxu0
        %306 = vmatprep.subr.mxu0 0.0
        %307 = vmatpush1.msra.mxu0 %v214
        %308 = vmatprep.subr.mxu0 0.0
        %309 = vmatpush1.msra.mxu0 %v215
        %310 = vmatprep.subr.mxu0 0.0
        %311 = vmatpush1.msra.mxu0 0.0
        %312 = vmatprep.subr.mxu0 0.0
        %313 = vmatpush1.msra.mxu0 0.0
        %314 = vmatprep.subr.mxu0 0.0
        %315 = vmatpush1.msra.mxu0 0.0
        %316 = vmatprep.subr.mxu0 0.0
        %317 = vmatpush1.msra.mxu0 0.0
        %318 = vmatprep.subr.mxu0 0.0
        %319 = vmatpush1.msra.mxu0 0.0
        %320 = vmatprep.subr.mxu0 0.0
        %321 = vmatpush1.msra.mxu0 0.0
        %322 = vmatprep.subr.mxu0 0.0
        %323 = vmatpush1.msra.mxu0 0.0
        %324 = vmatprep.subr.mxu0 0.0
        %325 = vmatpush1.msra.mxu0 0.0
        %326 = vmatprep.subr.mxu0 0.0
        %327 = vmatpush1.msra.mxu0 0.0
        %328 = vmatprep.subr.mxu0 0.0
        %329 = vmatpush1.msra.mxu0 0.0
        %330 = vmatprep.subr.mxu0 0.0
        %331 = vmatpush1.msra.mxu0 0.0
        %332 = vmatprep.subr.mxu0 0.0
        %333 = vmatpush1.msra.mxu0 0.0
        %334 = vmatprep.subr.mxu0 0.0
        %335 = vmatpush1.msra.mxu0 0.0
        %336 = vmatprep.subr.mxu0 0.0
        %337 = vmatpush1.msra.mxu0 0.0
        %338 = vmatprep.subr.mxu0 0.0
        %339 = vmatpush1.msra.mxu0 0.0
        %340 = vmatprep.subr.mxu0 0.0
        %341 = vmatpush1.msra.mxu0 0.0
        %342 = vmatprep.subr.mxu0 0.0
        %343 = vmatpush1.msra.mxu0 0.0
        %344 = vmatprep.subr.mxu0 0.0
        %345 = vmatpush1.msra.mxu0 0.0
        %346 = vmatprep.subr.mxu0 0.0
        %347 = vmatpush1.msra.mxu0 0.0
        %348 = vmatprep.subr.mxu0 0.0
        %349 = vmatpush1.msra.mxu0 0.0
        %350 = vmatprep.subr.mxu0 0.0
        %351 = vmatpush1.msra.mxu0 0.0
        %352 = vmatprep.subr.mxu0 0.0
        %353 = vmatpush1.msra.mxu0 0.0
        %354 = vmatprep.subr.mxu0 0.0
        %355 = vmatpush1.msra.mxu0 0.0
        %356 = vmatprep.subr.mxu0 0.0
        %357 = vmatpush1.msra.mxu0 0.0
        %358 = vmatprep.subr.mxu0 0.0
        %359 = vmatpush1.msra.mxu0 0.0
        %360 = vmatprep.subr.mxu0 0.0
        %361 = vmatpush1.msra.mxu0 0.0
        %362 = vmatprep.subr.mxu0 0.0
        %363 = vmatpush1.msra.mxu0 0.0
        %364 = vmatprep.subr.mxu0 0.0
        %365 = vmatpush1.msra.mxu0 0.0
        %366 = vmatprep.subr.mxu0 0.0
        %367 = vmatpush1.msra.mxu0 0.0
        %368 = vmatprep.subr.mxu0 0.0
        %369 = vmatpush1.msra.mxu0 0.0
        %370 = vmatprep.mubr.f32.mxu0 0.0
        %371 = vmatmul.mubr.f32.gmra.mrb[0].mxu0 %v226
        %v372 = vpop.f32.mrb[0].mxu0
        %v373 = vadd.f32 0.0, %v372
        %v374 = vpop.f32.mrb[0].mxu0
        %375 = vmatprep.mubr.f32.mxu0 0.0
        %376 = vmatmul.mubr.f32.gmra.mrb[0].mxu0 %v229
        %v377 = vpop.f32.mrb[0].mxu0
        %v378 = vadd.f32 0.0, %v377
        %v379 = vpop.f32.mrb[0].mxu0
        %380 = vdwg.mxu0
        %381 = vmatprep.subr.mxu0 0.0
        %382 = vmatpush1.msra.mxu0 %v216
        %383 = vmatprep.subr.mxu0 0.0
        %384 = vmatpush1.msra.mxu0 %v217
        %385 = vmatprep.subr.mxu0 0.0
        %386 = vmatpush1.msra.mxu0 0.0
        %387 = vmatprep.subr.mxu0 0.0
        %388 = vmatpush1.msra.mxu0 0.0
        %389 = vmatprep.subr.mxu0 0.0
        %390 = vmatpush1.msra.mxu0 0.0
        %391 = vmatprep.subr.mxu0 0.0
        %392 = vmatpush1.msra.mxu0 0.0
        %393 = vmatprep.subr.mxu0 0.0
        %394 = vmatpush1.msra.mxu0 0.0
        %395 = vmatprep.subr.mxu0 0.0
        %396 = vmatpush1.msra.mxu0 0.0
        %397 = vmatprep.subr.mxu0 0.0
        %398 = vmatpush1.msra.mxu0 0.0
        %399 = vmatprep.subr.mxu0 0.0
        %400 = vmatpush1.msra.mxu0 0.0
        %401 = vmatprep.subr.mxu0 0.0
        %402 = vmatpush1.msra.mxu0 0.0
        %403 = vmatprep.subr.mxu0 0.0
        %404 = vmatpush1.msra.mxu0 0.0
        %405 = vmatprep.subr.mxu0 0.0
        %406 = vmatpush1.msra.mxu0 0.0
        %407 = vmatprep.subr.mxu0 0.0
        %408 = vmatpush1.msra.mxu0 0.0
        %409 = vmatprep.subr.mxu0 0.0
        %410 = vmatpush1.msra.mxu0 0.0
        %411 = vmatprep.subr.mxu0 0.0
        %412 = vmatpush1.msra.mxu0 0.0
        %413 = vmatprep.subr.mxu0 0.0
        %414 = vmatpush1.msra.mxu0 0.0
        %415 = vmatprep.subr.mxu0 0.0
        %416 = vmatpush1.msra.mxu0 0.0
        %417 = vmatprep.subr.mxu0 0.0
        %418 = vmatpush1.msra.mxu0 0.0
        %419 = vmatprep.subr.mxu0 0.0
        %420 = vmatpush1.msra.mxu0 0.0
        %421 = vmatprep.subr.mxu0 0.0
        %422 = vmatpush1.msra.mxu0 0.0
        %423 = vmatprep.subr.mxu0 0.0
        %424 = vmatpush1.msra.mxu0 0.0
        %425 = vmatprep.subr.mxu0 0.0
        %426 = vmatpush1.msra.mxu0 0.0
        %427 = vmatprep.subr.mxu0 0.0
        %428 = vmatpush1.msra.mxu0 0.0
        %429 = vmatprep.subr.mxu0 0.0
        %430 = vmatpush1.msra.mxu0 0.0
        %431 = vmatprep.subr.mxu0 0.0
        %432 = vmatpush1.msra.mxu0 0.0
        %433 = vmatprep.subr.mxu0 0.0
        %434 = vmatpush1.msra.mxu0 0.0
        %435 = vmatprep.subr.mxu0 0.0
        %436 = vmatpush1.msra.mxu0 0.0
        %437 = vmatprep.subr.mxu0 0.0
        %438 = vmatpush1.msra.mxu0 0.0
        %439 = vmatprep.subr.mxu0 0.0
        %440 = vmatpush1.msra.mxu0 0.0
        %441 = vmatprep.subr.mxu0 0.0
        %442 = vmatpush1.msra.mxu0 0.0
        %443 = vmatprep.subr.mxu0 0.0
        %444 = vmatpush1.msra.mxu0 0.0
        %445 = vmatprep.mubr.f32.mxu0 0.0
        %446 = vmatmul.mubr.f32.gmra.mrb[0].mxu0 %v226
        %v447 = vpop.f32.mrb[0].mxu0
        %v448 = vadd.f32 0.0, %v447
        %v449 = vpop.f32.mrb[0].mxu0
        %450 = vmatprep.mubr.f32.mxu0 0.0
        %451 = vmatmul.mubr.f32.gmra.mrb[0].mxu0 %v229
        %v452 = vpop.f32.mrb[0].mxu0
        %v453 = vadd.f32 0.0, %v452
        %v454 = vpop.f32.mrb[0].mxu0
        %455 = vdwg.mxu0
        %456 = vmatprep.subr.mxu0 0.0
        %457 = vmatpush1.msra.mxu0 %v218
        %458 = vmatprep.subr.mxu0 0.0
        %459 = vmatpush1.msra.mxu0 %v219
        %460 = vmatprep.subr.mxu0 0.0
        %461 = vmatpush1.msra.mxu0 0.0
        %462 = vmatprep.subr.mxu0 0.0
        %463 = vmatpush1.msra.mxu0 0.0
        %464 = vmatprep.subr.mxu0 0.0
        %465 = vmatpush1.msra.mxu0 0.0
        %466 = vmatprep.subr.mxu0 0.0
        %467 = vmatpush1.msra.mxu0 0.0
        %468 = vmatprep.subr.mxu0 0.0
        %469 = vmatpush1.msra.mxu0 0.0
        %470 = vmatprep.subr.mxu0 0.0
        %471 = vmatpush1.msra.mxu0 0.0
        %472 = vmatprep.subr.mxu0 0.0
        %473 = vmatpush1.msra.mxu0 0.0
        %474 = vmatprep.subr.mxu0 0.0
        %475 = vmatpush1.msra.mxu0 0.0
        %476 = vmatprep.subr.mxu0 0.0
        %477 = vmatpush1.msra.mxu0 0.0
        %478 = vmatprep.subr.mxu0 0.0
        %479 = vmatpush1.msra.mxu0 0.0
        %480 = vmatprep.subr.mxu0 0.0
        %481 = vmatpush1.msra.mxu0 0.0
        %482 = vmatprep.subr.mxu0 0.0
        %483 = vmatpush1.msra.mxu0 0.0
        %484 = vmatprep.subr.mxu0 0.0
        %485 = vmatpush1.msra.mxu0 0.0
        %486 = vmatprep.subr.mxu0 0.0
        %487 = vmatpush1.msra.mxu0 0.0
        %488 = vmatprep.subr.mxu0 0.0
        %489 = vmatpush1.msra.mxu0 0.0
        %490 = vmatprep.subr.mxu0 0.0
        %491 = vmatpush1.msra.mxu0 0.0
        %492 = vmatprep.subr.mxu0 0.0
        %493 = vmatpush1.msra.mxu0 0.0
        %494 = vmatprep.subr.mxu0 0.0
        %495 = vmatpush1.msra.mxu0 0.0
        %496 = vmatprep.subr.mxu0 0.0
        %497 = vmatpush1.msra.mxu0 0.0
        %498 = vmatprep.subr.mxu0 0.0
        %499 = vmatpush1.msra.mxu0 0.0
        %500 = vmatprep.subr.mxu0 0.0
        %501 = vmatpush1.msra.mxu0 0.0
        %502 = vmatprep.subr.mxu0 0.0
        %503 = vmatpush1.msra.mxu0 0.0
        %504 = vmatprep.subr.mxu0 0.0
        %505 = vmatpush1.msra.mxu0 0.0
        %506 = vmatprep.subr.mxu0 0.0
        %507 = vmatpush1.msra.mxu0 0.0
        %508 = vmatprep.subr.mxu0 0.0
        %509 = vmatpush1.msra.mxu0 0.0
        %510 = vmatprep.subr.mxu0 0.0
        %511 = vmatpush1.msra.mxu0 0.0
        %512 = vmatprep.subr.mxu0 0.0
        %513 = vmatpush1.msra.mxu0 0.0
        %514 = vmatprep.subr.mxu0 0.0
        %515 = vmatpush1.msra.mxu0 0.0
        %516 = vmatprep.subr.mxu0 0.0
        %517 = vmatpush1.msra.mxu0 0.0
        %518 = vmatprep.subr.mxu0 0.0
        %519 = vmatpush1.msra.mxu0 0.0
        %520 = vmatprep.mubr.f32.mxu0 0.0
        %521 = vmatmul.mubr.f32.gmra.mrb[0].mxu0 %v226
        %v522 = vpop.f32.mrb[0].mxu0
        %v523 = vadd.f32 0.0, %v522
        %v524 = vpop.f32.mrb[0].mxu0
        %525 = vmatprep.mubr.f32.mxu0 0.0
        %526 = vmatmul.mubr.f32.gmra.mrb[0].mxu0 %v229
        %v527 = vpop.f32.mrb[0].mxu0
        %v528 = vadd.f32 0.0, %v527
        %v529 = vpop.f32.mrb[0].mxu0
        %530 = vdwg.mxu0
        %vm531 = vcmask 97280
        %v533 = vsel %vm531, %v298, 0
        %v536 = vsel %vm531, %v303, 0
        %v539 = vsel %vm531, %v373, 0
        %v542 = vsel %vm531, %v378, 0
        %v545 = vsel %vm531, %v448, 0
        %v548 = vsel %vm531, %v453, 0
        %v551 = vsel %vm531, %v523, 0
        %v554 = vsel %vm531, %v528, 0
        %vm556 = vcmask 1043456
        %v558 = vsel %vm556, %v223, 0
        %560 = vmatprep.subr.mxu0 0.0
        %561 = vmatpush1.msra.mxu0 %v222
        %562 = vmatprep.subr.mxu0 0.0
        %563 = vmatpush1.msra.mxu0 %v558
        %564 = vmatprep.subr.mxu0 0.0
        %565 = vmatpush1.msra.mxu0 0.0
        %566 = vmatprep.subr.mxu0 0.0
        %567 = vmatpush1.msra.mxu0 0.0
        %568 = vmatprep.subr.mxu0 0.0
        %569 = vmatpush1.msra.mxu0 0.0
        %570 = vmatprep.subr.mxu0 0.0
        %571 = vmatpush1.msra.mxu0 0.0
        %572 = vmatprep.subr.mxu0 0.0
        %573 = vmatpush1.msra.mxu0 0.0
        %574 = vmatprep.subr.mxu0 0.0
        %575 = vmatpush1.msra.mxu0 0.0
        %576 = vmatprep.subr.mxu0 0.0
        %577 = vmatpush1.msra.mxu0 0.0
        %578 = vmatprep.subr.mxu0 0.0
        %579 = vmatpush1.msra.mxu0 0.0
        %580 = vmatprep.subr.mxu0 0.0
        %581 = vmatpush1.msra.mxu0 0.0
        %582 = vmatprep.subr.mxu0 0.0
        %583 = vmatpush1.msra.mxu0 0.0
        %584 = vmatprep.subr.mxu0 0.0
        %585 = vmatpush1.msra.mxu0 0.0
        %586 = vmatprep.subr.mxu0 0.0
        %587 = vmatpush1.msra.mxu0 0.0
        %588 = vmatprep.subr.mxu0 0.0
        %589 = vmatpush1.msra.mxu0 0.0
        %590 = vmatprep.subr.mxu0 0.0
        %591 = vmatpush1.msra.mxu0 0.0
        %592 = vmatprep.subr.mxu0 0.0
        %593 = vmatpush1.msra.mxu0 0.0
        %594 = vmatprep.subr.mxu0 0.0
        %595 = vmatpush1.msra.mxu0 0.0
        %596 = vmatprep.subr.mxu0 0.0
        %597 = vmatpush1.msra.mxu0 0.0
        %598 = vmatprep.subr.mxu0 0.0
        %599 = vmatpush1.msra.mxu0 0.0
        %600 = vmatprep.subr.mxu0 0.0
        %601 = vmatpush1.msra.mxu0 0.0
        %602 = vmatprep.subr.mxu0 0.0
        %603 = vmatpush1.msra.mxu0 0.0
        %604 = vmatprep.subr.mxu0 0.0
        %605 = vmatpush1.msra.mxu0 0.0
        %606 = vmatprep.subr.mxu0 0.0
        %607 = vmatpush1.msra.mxu0 0.0
        %608 = vmatprep.subr.mxu0 0.0
        %609 = vmatpush1.msra.mxu0 0.0
        %610 = vmatprep.subr.mxu0 0.0
        %611 = vmatpush1.msra.mxu0 0.0
        %612 = vmatprep.subr.mxu0 0.0
        %613 = vmatpush1.msra.mxu0 0.0
        %614 = vmatprep.subr.mxu0 0.0
        %615 = vmatpush1.msra.mxu0 0.0
        %616 = vmatprep.subr.mxu0 0.0
        %617 = vmatpush1.msra.mxu0 0.0
        %618 = vmatprep.subr.mxu0 0.0
        %619 = vmatpush1.msra.mxu0 0.0
        %620 = vmatprep.subr.mxu0 0.0
        %621 = vmatpush1.msra.mxu0 0.0
        %622 = vmatprep.subr.mxu0 0.0
        %623 = vmatpush1.msra.mxu0 0.0
        %624 = vmatprep.mubr.f32.mxu0 0.0
        %625 = vmatmul.mubr.f32.gmra.mrb[0].mxu0 %v533
        %v626 = vpop.f32.mrb[0].mxu0
        %v627 = vadd.f32 0.0, %v626
        %v628 = vpop.f32.mrb[0].mxu0
        %629 = vmatprep.mubr.f32.mxu0 0.0
        %630 = vmatmul.mubr.f32.gmra.mrb[0].mxu0 %v536
        %v631 = vpop.f32.mrb[0].mxu0
        %v632 = vadd.f32 0.0, %v631
        %v633 = vpop.f32.mrb[0].mxu0
        %634 = vmatprep.mubr.f32.mxu0 0.0
        %635 = vmatmul.mubr.f32.gmra.mrb[0].mxu0 %v539
        %v636 = vpop.f32.mrb[0].mxu0
        %v637 = vadd.f32 0.0, %v636
        %v638 = vpop.f32.mrb[0].mxu0
        %639 = vmatprep.mubr.f32.mxu0 0.0
        %640 = vmatmul.mubr.f32.gmra.mrb[0].mxu0 %v542
        %v641 = vpop.f32.mrb[0].mxu0
        %v642 = vadd.f32 0.0, %v641
        %v643 = vpop.f32.mrb[0].mxu0
        %644 = vmatprep.mubr.f32.mxu0 0.0
        %645 = vmatmul.mubr.f32.gmra.mrb[0].mxu0 %v545
        %v646 = vpop.f32.mrb[0].mxu0
        %v647 = vadd.f32 0.0, %v646
        %v648 = vpop.f32.mrb[0].mxu0
        %649 = vmatprep.mubr.f32.mxu0 0.0
        %650 = vmatmul.mubr.f32.gmra.mrb[0].mxu0 %v548
        %v651 = vpop.f32.mrb[0].mxu0
        %v652 = vadd.f32 0.0, %v651
        %v653 = vpop.f32.mrb[0].mxu0
        %654 = vmatprep.mubr.f32.mxu0 0.0
        %655 = vmatmul.mubr.f32.gmra.mrb[0].mxu0 %v551
        %v656 = vpop.f32.mrb[0].mxu0
        %v657 = vadd.f32 0.0, %v656
        %v658 = vpop.f32.mrb[0].mxu0
        %659 = vmatprep.mubr.f32.mxu0 0.0
        %660 = vmatmul.mubr.f32.gmra.mrb[0].mxu0 %v554
        %v661 = vpop.f32.mrb[0].mxu0
        %v662 = vadd.f32 0.0, %v661
        %v663 = vpop.f32.mrb[0].mxu0
        %664 = vdwg.mxu0
        %665 = vst [vmem:[%s196] sm:$0xff] %v627
        %666 = vst [vmem:[%s196 + $0x8] sm:$0xff] %v632
        %667 = vst [vmem:[%s196 + $0x10] sm:$0xff] %v637
        %668 = vst [vmem:[%s196 + $0x18] sm:$0xff] %v642
        %669 = vst [vmem:[%s196 + $0x20] sm:$0xff] %v647
        %670 = vst [vmem:[%s196 + $0x28] sm:$0xff] %v652
        %671 = vst [vmem:[%s196 + $0x30] sm:$0xff] %v657
        %672 = vst [vmem:[%s196 + $0x38] sm:$0xff] %v662
        %s673 = sand.u32 %s112, 1
        %s674 = scalar_lea.sflag [#allocation3], %s673
        %s675 = sand.u32 %s112, 1
        %s676 = smul.addr %s675, 64
        %s677 = scalar_lea.vmem [#allocation2], %s676
        // Predicated region
        $region33: #{tpu_custom_call.1} parent=31 // pred_check
          %p678 = pneg %p122
        $region34: #{tpu_custom_call.1} parent=31 // pred_check_branch
          %680 = sbr.rel (%p678) target = $region36
        $region35: #{tpu_custom_call.1} parent=31 // pred_region
          %s681 = smul.u32 4, %s21
          %s682 = smul.u32 2, %s22
          %s684 = ssub.s32 1024, 1024
          %685 = vsyncadd %s674, %s684
          %s686 = smul.addr %s681, 2
          %s687 = sadd.s32 %s682, %s686
          %s688 = smul.addr %s687, 128
          %s689 = scalar_lea.hbm %s3, %s688
          %s690 = sshll.u32 %s677, 4
          %s691 = int_to_ptr.vmem [resolvable:$true] %s690
          %696 = dma.vmem_to_hbm [thread:$0]  %s691, 1024, %s689, %s674, 128, 128, 8
        $region36: #{tpu_custom_call.1} parent=31 // pred_fallthru
          _
      $region32: #{tpu_custom_call.1} parent=5 // pred_fallthru
        _
      %p697 = scmp.le.s32.totalorder 2, %s12
      // Predicated region
      $region37: #{tpu_custom_call.1} parent=5 // pred_check
        %p698 = pneg %p697
      $region38: #{tpu_custom_call.1} parent=5 // pred_check_branch
        %700 = sbr.rel (%p698) target = $region40
      $region39: #{tpu_custom_call.1} parent=5 // pred_region
        %s701 = ssub.s32 %s12, 2
        // Predicated region
        $region41: #{tpu_custom_call.1} parent=39 // pred_check
          %p702 = pneg %p128
        $region42: #{tpu_custom_call.1} parent=39 // pred_check_branch
          %704 = sbr.rel (%p702) target = $region44
        $region43: #{tpu_custom_call.1} parent=39 // pred_region
          %s705 = sand.u32 %s113, 1
          %s706 = scalar_lea.sflag [#allocation3], %s705
          %s707 = sand.u32 %s113, 1
          %s708 = smul.addr %s707, 64
          %s709 = scalar_lea.vmem [#allocation2], %s708
          %710 = dma.done %s706, 1024
        $region44: #{tpu_custom_call.1} parent=39 // pred_fallthru
          _
      $region40: #{tpu_custom_call.1} parent=5 // pred_fallthru
        _
    $region6: #{tpu_custom_call.1} parent=1 // loop_footer
      %s16 = sadd.s32 1, %s12
    $region7: #{tpu_custom_call.1} parent=1 // loop_footer_branch
      %11 = sbr.rel target = $region3
    $region8: #{tpu_custom_call.1} parent=1 // loop_exit
      _
    %711 = vsyncpa [#allocation3], 1
    %s712 = scalar_lea.sflag [#allocation3], 1
    %713 = vsyncpa %s712, 1

</llo_original>
